<compile_context>
chip_gen: v7x
topology: tpu7x:2x2x1
jax: 0.10.0
libtpu: 0.0.40
codegen_flags: <defaults>
</compile_context>

<pallas_src>
import math
import functools

import jax
import jax.numpy as jnp
from jax import lax
from jax.experimental import pallas as pl
from jax.experimental.pallas import tpu as pltpu


# ----------------------------- small test config -----------------------------
VOCAB_SIZE = 256        # production: 50257 (pad to 50304 for 128-lane vocab tiles)
CONTEXT_LEN = 16
EMBED_DIM = 32          # production: 768
N_HEADS = 4             # production: 12
N_LAYERS = 2            # production: 12
FF_DIM = 4 * EMBED_DIM
HEAD_DIM = EMBED_DIM // N_HEADS
LN_EPS = 1e-5

BATCH = 2
SEQ_LEN = 8

# LM-head tiles (clamped to the toy shapes below).  Large token tiles push arithmetic
# intensity over the weight-streaming roofline; V_TILE a large multiple of 128 keeps
# stores lane-dense and cuts per-grid-step pipeline overhead.
TOK_TILE = 512
V_TILE = 512

# Row layout of the packed per-layer small-vector block (one DMA instead of 7).
ROW_LN1_G, ROW_LN1_B, ROW_ATTN_BO, ROW_LN2_G, ROW_LN2_B, ROW_FF_B1, ROW_FF_B2 = range(7)
N_VEC_ROWS = 8  # padded to a full sublane group


# --------------------------------- helpers -----------------------------------
def _vmem_limit_bytes(frac=0.85, fallback=64 << 20):
    """Explicit scoped-VMEM limit: ~85% of physical (≈54 MiB v7x, ≈109 MiB v5e/v6e)."""
    try:
        cap = int(pltpu.get_tpu_info().vmem_capacity_bytes)
        if cap > 0:
            return int(cap * frac)
    except Exception:
        pass
    return fallback


def _layer_norm(x, gamma, beta, eps=LN_EPS):
    # x: (N, D) f32, gamma/beta: (1, D) f32
    mu = jnp.mean(x, axis=-1, keepdims=True)
    var = jnp.mean((x - mu) ** 2, axis=-1, keepdims=True)
    return (x - mu) * lax.rsqrt(var + eps) * gamma + beta


def _gelu_tanh(x):
    # GPT-2 tanh-approximation GELU (runs in bf16 on v6e/v7x; keep f32 on v5e).
    c = math.sqrt(2.0 / math.pi)
    return 0.5 * x * (1.0 + jnp.tanh(c * (x + 0.044715 * x * x * x)))


# ----------------- Pallas kernel: fused transformer stack + final LN ----------
def gpt_stack_kernel(x_ref, wqkv_ref, wo_ref, w1_ref, w2_ref, vec_ref, lnf_ref,
                     o_ref, x_sc, ctx_sc, *, n_heads):
    """One (batch-slice, layer) grid cell.

    grid = (batch, n_layers): batch axis 'parallel' (megacore-sharded on v7x), layer
    axis 'arbitrary' carrying the residual stream in the f32 VMEM scratch x_sc.  The
    final LayerNorm is fused into the last layer's epilogue.
    """
    l = pl.program_id(1)
    n_layers = pl.num_programs(1)
    seq_len, d = x_sc.shape
    hd = d // n_heads

    # Layer 0: load this batch slice's (token + position) embeddings into the resident
    # f32 residual stream.
    @pl.when(l == 0)
    def _():
        x_sc[...] = x_ref[...].astype(jnp.float32)

    x = x_sc[...]                                            # (T, D) f32
    vec = vec_ref[0]                                         # (8, F) packed vectors

    ln1_g = vec[ROW_LN1_G:ROW_LN1_G + 1, :d]
    ln1_b = vec[ROW_LN1_B:ROW_LN1_B + 1, :d]
    bo    = vec[ROW_ATTN_BO:ROW_ATTN_BO + 1, :d]
    ln2_g = vec[ROW_LN2_G:ROW_LN2_G + 1, :d]
    ln2_b = vec[ROW_LN2_B:ROW_LN2_B + 1, :d]
    b1    = vec[ROW_FF_B1:ROW_FF_B1 + 1, :]
    b2    = vec[ROW_FF_B2:ROW_FF_B2 + 1, :d]

    # ---------------- pre-norm causal multi-head self-attention ----------------
    xn = _layer_norm(x, ln1_g, ln1_b)
    # Fused QKV projection: one lane-dense (T, D) x (D, 3D) MXU matmul, bf16 in/f32 acc.
    qkv = jnp.dot(xn.astype(jnp.bfloat16), wqkv_ref[0],
                  preferred_element_type=jnp.float32)        # (T, 3D)

    # causal mask for one (T, T) score tile (mask strictly above the diagonal)
    row = lax.broadcasted_iota(jnp.int32, (seq_len, seq_len), 0)
    col = lax.broadcasted_iota(jnp.int32, (seq_len, seq_len), 1)
    causal = col > row

    # TODO(synk): at production (H=12, Hd=64, T=1024) replace this unrolled head loop
    # with a fori_loop over a head-major qkv staging buffer so the per-head slices are
    # leading-axis indexes rather than sub-128 lane extracts, and pre-transpose K.
    for h in range(n_heads):
        c0 = h * hd
        q = qkv[:, c0:c0 + hd].astype(jnp.bfloat16)          # 1/sqrt(Hd) folded into Wq
        k = qkv[:, d + c0:d + c0 + hd].astype(jnp.bfloat16)
        v = qkv[:, 2 * d + c0:2 * d + c0 + hd].astype(jnp.bfloat16)
        s = lax.dot_general(q, k, (((1,), (1,)), ((), ())),
                            preferred_element_type=jnp.float32)      # (T, T)
        s = jnp.where(causal, -1e30, s)
        s = s - jnp.max(s, axis=-1, keepdims=True)
        p = jnp.exp(s)
        p = p * pl.reciprocal(jnp.sum(p, axis=-1, keepdims=True), approx=True)
        ctx = jnp.dot(p.astype(jnp.bfloat16), v,
                      preferred_element_type=jnp.float32)            # (T, Hd)
        # Stage each head's context at its lane offset; no per-head K=Hd matmuls.
        ctx_sc[:, c0:c0 + hd] = ctx.astype(jnp.bfloat16)

    # ONE full-depth (T, D) x (D, D) output projection (K = D fills the MXU).
    attn = jnp.dot(ctx_sc[...], wo_ref[0],
                   preferred_element_type=jnp.float32) + bo          # (T, D) f32
    x = x + attn                                                     # residual (dropout = id)

    # ------------------------- pre-norm GELU feed-forward ----------------------
    xn2 = _layer_norm(x, ln2_g, ln2_b)
    hid = jnp.dot(xn2.astype(jnp.bfloat16), w1_ref[0],
                  preferred_element_type=jnp.float32) + b1           # (T, F) f32
    hid = _gelu_tanh(hid.astype(jnp.bfloat16))                       # bf16 GELU
    # TODO(synk): at production sizes tile F here (accumulate into a VMEM scratch).
    ff = jnp.dot(hid, w2_ref[0],
                 preferred_element_type=jnp.float32) + b2            # (T, D) f32
    x = x + ff                                                       # residual

    x_sc[...] = x

    # Last layer: fused final LayerNorm, emit bf16 activations for the LM head.
    @pl.when(l == n_layers - 1)
    def _():
        o_ref[...] = _layer_norm(x, lnf_ref[0:1, :], lnf_ref[1:2, :]).astype(o_ref.dtype)


# ------------------------- Pallas kernel: LM head matmul ----------------------
def lm_head_kernel(x_ref, w_ref, o_ref):
    # (tTok, D) bf16 x (D, tV) bf16 -> f32 accumulate on the MXU, bf16 lane-dense store.
    o_ref[...] = jnp.dot(x_ref[...], w_ref[...],
                         preferred_element_type=jnp.float32).astype(o_ref.dtype)


# ------------------------------ wrappers --------------------------------------
def run_gpt_stack(x_tok, blocks, lnf, *, batch, seq_len):
    ntok, d = x_tok.shape
    f = FF_DIM
    n_layers = blocks["wqkv"].shape[0]
    kernel = functools.partial(gpt_stack_kernel, n_heads=N_HEADS)

    def wspec(shape):
        return pl.BlockSpec(shape, lambda b, l: (l, 0, 0))

    return pl.pallas_call(
        kernel,
        out_shape=jax.ShapeDtypeStruct((ntok, d), jnp.bfloat16),
        grid=(batch, n_layers),
        in_specs=[
            pl.BlockSpec((seq_len, d), lambda b, l: (b, 0)),   # x: one batch slice
            wspec((1, d, 3 * d)),                              # wqkv (bf16, Q pre-scaled)
            wspec((1, d, d)),                                  # wo   (bf16)
            wspec((1, d, f)),                                  # w1   (bf16)
            wspec((1, f, d)),                                  # w2   (bf16)
            wspec((1, N_VEC_ROWS, f)),                         # packed ln/bias vectors
            pl.BlockSpec((2, d), lambda b, l: (0, 0)),         # final-LN gamma/beta
        ],
        out_specs=pl.BlockSpec((seq_len, d), lambda b, l: (b, 0)),
        scratch_shapes=[
            pltpu.VMEM((seq_len, d), jnp.float32),    # resident residual stream
            pltpu.VMEM((seq_len, d), jnp.bfloat16),   # per-layer attention ctx staging
        ],
        compiler_params=pltpu.CompilerParams(
            dimension_semantics=("parallel", "arbitrary"),
            vmem_limit_bytes=_vmem_limit_bytes()),
    )(x_tok, blocks["wqkv"], blocks["wo"], blocks["w1"], blocks["w2"],
      blocks["vecs"], lnf)


def run_lm_head(xn, w_head):
    ntok, d = xn.shape
    v = w_head.shape[1]
    t_tok = min(TOK_TILE, ntok)
    t_v = min(V_TILE, v)
    # TODO(synk): for real GPT-2 pad V 50257 -> 50304 so the vocab axis tiles by 128.
    assert ntok % t_tok == 0 and v % t_v == 0
    return pl.pallas_call(
        lm_head_kernel,
        out_shape=jax.ShapeDtypeStruct((ntok, v), jnp.bfloat16),  # bf16 logits: halve HBM writes
        grid=(ntok // t_tok, v // t_v),
        in_specs=[
            pl.BlockSpec((t_tok, d), lambda i, j: (i, 0)),   # activations
            pl.BlockSpec((d, t_v), lambda i, j: (0, j)),     # vocab-tiled head weight
        ],
        out_specs=pl.BlockSpec((t_tok, t_v), lambda i, j: (i, j)),
        compiler_params=pltpu.CompilerParams(
            dimension_semantics=("parallel", "parallel"),
            vmem_limit_bytes=_vmem_limit_bytes()),
    )(xn, w_head)


# ------------------------- parameter initialization ---------------------------
def init_params(key):
    def normal(k, shape, std=0.02):
        return jax.random.normal(k, shape, dtype=jnp.float32) * std

    d, f = EMBED_DIM, FF_DIM
    keys = jax.random.split(key, 3 + N_LAYERS)
    params = {
        "wte": normal(keys[0], (VOCAB_SIZE, d)),
        # NOTE: module defines position_embedding as Embedding(vocab_size, embed_dim);
        # only rows [0, seq_len) are ever indexed.
        "wpe": normal(keys[1], (VOCAB_SIZE, d)),
        # final LayerNorm packed as [gamma; beta]
        "lnf": jnp.concatenate([jnp.ones((1, d), jnp.float32),
                                jnp.zeros((1, d), jnp.float32)], axis=0),
        # LM head stored (D, V) == Linear(D, V, bias=False).weight.T; bf16 for the MXU.
        # TODO(synk): quantize to int8 (v5e/v6e) or fp8 (v7x) with per-column scales.
        "w_head": normal(keys[2], (d, VOCAB_SIZE)).astype(jnp.bfloat16),
    }

    scale = 1.0 / math.sqrt(HEAD_DIM)
    wqkv, wo, w1, w2, vecs = [], [], [], [], []
    for li in range(N_LAYERS):
        bk = jax.random.split(keys[3 + li], 6)
        wq = normal(bk[0], (d, d)) * scale            # fold 1/sqrt(Hd) into Wq
        wk = normal(bk[1], (d, d))
        wv = normal(bk[2], (d, d))                    # qkv_bias=False -> no q/k/v biases
        wqkv.append(jnp.concatenate([wq, wk, wv], axis=1).astype(jnp.bfloat16))
        wo.append(normal(bk[3], (d, d)).astype(jnp.bfloat16))
        w1.append(normal(bk[4], (d, f)).astype(jnp.bfloat16))
        w2.append(normal(bk[5], (f, d)).astype(jnp.bfloat16))
        # packed per-layer small vectors: ln1 g/b, attn out bias, ln2 g/b, ffn b1/b2
        vec = jnp.zeros((N_VEC_ROWS, f), jnp.float32)
        vec = vec.at[ROW_LN1_G, :d].set(1.0)
        vec = vec.at[ROW_LN2_G, :d].set(1.0)
        vecs.append(vec)

    params["blocks"] = {
        "wqkv": jnp.stack(wqkv), "wo": jnp.stack(wo),
        "w1": jnp.stack(w1), "w2": jnp.stack(w2), "vecs": jnp.stack(vecs),
    }
    return params


# --------------------------------- forward ------------------------------------
@jax.jit
def gpt_forward(inputs, params):
    # inputs: (B, T) int32 token ids
    b, t = inputs.shape
    tok = jnp.take(params["wte"], inputs, axis=0)          # (B, T, D) gather (glue)
    pos = params["wpe"][:t][None, :, :]                    # (1, T, D)
    # dropout = identity (eval); feed the stack bf16 to halve the one-time HBM read
    x = (tok + pos).astype(jnp.bfloat16).reshape(b * t, EMBED_DIM)
    xn = run_gpt_stack(x, params["blocks"], params["lnf"],
                       batch=b, seq_len=t)                 # (B*T, D) bf16, final-LN applied
    logits = run_lm_head(xn, params["w_head"])             # (B*T, V) bf16
    return logits.reshape(b, t, VOCAB_SIZE)


if __name__ == "__main__":
    key = jax.random.PRNGKey(0)
    pkey, ikey = jax.random.split(key)
    params = init_params(pkey)

    inputs = jax.random.randint(ikey, (BATCH, SEQ_LEN), 0, VOCAB_SIZE, dtype=jnp.int32)

    logits = gpt_forward(inputs, params)
    jax.block_until_ready(logits)

    assert logits.shape == (BATCH, SEQ_LEN, VOCAB_SIZE), logits.shape
    assert bool(jnp.all(jnp.isfinite(logits.astype(jnp.float32))))
    print("KERNEL_OK")
</pallas_src>

<mosaic_0001>
module attributes {stable_mosaic.version = 11 : i64} {
  func.func @lm_head_kernel(%arg0: i32, %arg1: i32, %arg2: memref<16x32xbf16, #tpu.memory_space<vmem>>, %arg3: memref<32x256xbf16, #tpu.memory_space<vmem>>, %arg4: memref<16x256xbf16, #tpu.memory_space<vmem>>) attributes {dimension_semantics = [#tpu.dimension_semantics<parallel>, #tpu.dimension_semantics<parallel>], iteration_bounds = array<i64: 1, 1>, scalar_prefetch = 0 : i64, scratch_operands = 0 : i64, tpu.core_type = #tpu.core_type<tc>, window_params = [{transform_indices = @transform_0, window_bounds = array<i64: 16, 32>}, {transform_indices = @transform_1, window_bounds = array<i64: 32, 256>}, {transform_indices = @transform_2, window_bounds = array<i64: 16, 256>}]} {
    %c0 = arith.constant 0 : index
    %c0_0 = arith.constant 0 : index
    %0 = vector.load %arg2[%c0, %c0_0] : memref<16x32xbf16, #tpu.memory_space<vmem>>, vector<16x32xbf16>
    %c0_1 = arith.constant 0 : index
    %c0_2 = arith.constant 0 : index
    %1 = vector.load %arg3[%c0_1, %c0_2] : memref<32x256xbf16, #tpu.memory_space<vmem>>, vector<32x256xbf16>
    %cst = arith.constant dense<0.000000e+00> : vector<16x256xf32>
    %2 = tpu.matmul %0, %1, %cst {dimension_numbers = #tpu.dot_dimension_numbers<[1], [0], [0], [1], [0, 0, 1, 1], [], []>} : vector<16x32xbf16>, vector<32x256xbf16>, vector<16x256xf32> -> vector<16x256xf32>
    %3 = arith.truncf %2 : vector<16x256xf32> to vector<16x256xbf16>
    %c0_3 = arith.constant 0 : index
    %c0_4 = arith.constant 0 : index
    %4 = vector.load %arg4[%c0_3, %c0_4] : memref<16x256xbf16, #tpu.memory_space<vmem>>, vector<16x256xbf16>
    tpu.vector_store %arg4[%c0_3, %c0_4], %3 {strides = array<i32>} : memref<16x256xbf16, #tpu.memory_space<vmem>>, vector<16x256xbf16>,
    return
  }
  func.func @transform_0(%arg0: i32, %arg1: i32) -> (i32, i32) {
    %c0_i32 = arith.constant 0 : i32
    %c0_i32_0 = arith.constant 0 : i32
    return %arg0, %c0_i32 : i32, i32
  }
  func.func @transform_1(%arg0: i32, %arg1: i32) -> (i32, i32) {
    %c0_i32 = arith.constant 0 : i32
    %c0_i32_0 = arith.constant 0 : i32
    return %c0_i32, %arg1 : i32, i32
  }
  func.func @transform_2(%arg0: i32, %arg1: i32) -> (i32, i32) {
    %c0_i32 = arith.constant 0 : i32
    return %arg0, %arg1 : i32, i32
  }
}

module attributes {stable_mosaic.version = 11 : i64} {
  func.func @gpt_stack_kernel(%arg0: i32, %arg1: i32, %arg2: memref<8x32xbf16, #tpu.memory_space<vmem>>, %arg3: memref<1x32x96xbf16, #tpu.memory_space<vmem>>, %arg4: memref<1x32x32xbf16, #tpu.memory_space<vmem>>, %arg5: memref<1x32x128xbf16, #tpu.memory_space<vmem>>, %arg6: memref<1x128x32xbf16, #tpu.memory_space<vmem>>, %arg7: memref<1x8x128xf32, #tpu.memory_space<vmem>>, %arg8: memref<2x32xf32, #tpu.memory_space<vmem>>, %arg9: memref<8x32xbf16, #tpu.memory_space<vmem>>, %arg10: memref<8x32xf32, #tpu.memory_space<vmem>>, %arg11: memref<8x32xbf16, #tpu.memory_space<vmem>>) attributes {dimension_semantics = [#tpu.dimension_semantics<parallel>, #tpu.dimension_semantics<arbitrary>], iteration_bounds = array<i64: 2, 2>, scalar_prefetch = 0 : i64, scratch_operands = 2 : i64, tpu.core_type = #tpu.core_type<tc>, window_params = [{transform_indices = @transform_0, window_bounds = array<i64: 8, 32>}, {transform_indices = @transform_1, window_bounds = array<i64: 1, 32, 96>}, {transform_indices = @transform_2, window_bounds = array<i64: 1, 32, 32>}, {transform_indices = @transform_3, window_bounds = array<i64: 1, 32, 128>}, {transform_indices = @transform_4, window_bounds = array<i64: 1, 128, 32>}, {transform_indices = @transform_5, window_bounds = array<i64: 1, 8, 128>}, {pipeline_mode = #tpu.pipeline_mode<synchronous>, transform_indices = @transform_6, window_bounds = array<i64: 2, 32>}, {transform_indices = @transform_7, window_bounds = array<i64: 8, 32>}]} {
    %c0_i32 = arith.constant 0 : i32
    %0 = arith.cmpi eq, %arg1, %c0_i32 : i32
    %1 = arith.extui %0 : i1 to i32
    %c0_i32_0 = arith.constant 0 : i32
    %2 = arith.cmpi ne, %1, %c0_i32_0 : i32
    scf.if %2 {
      %c0_64 = arith.constant 0 : index
      %c0_65 = arith.constant 0 : index
      %193 = vector.load %arg2[%c0_64, %c0_65] : memref<8x32xbf16, #tpu.memory_space<vmem>>, vector<8x32xbf16>
      %194 = arith.extf %193 : vector<8x32xbf16> to vector<8x32xf32>
      %c0_66 = arith.constant 0 : index
      %c0_67 = arith.constant 0 : index
      %195 = vector.load %arg10[%c0_66, %c0_67] : memref<8x32xf32, #tpu.memory_space<vmem>>, vector<8x32xf32>
      tpu.vector_store %arg10[%c0_66, %c0_67], %194 {strides = array<i32>} : memref<8x32xf32, #tpu.memory_space<vmem>>, vector<8x32xf32>,
    } else {
    }
    %c0 = arith.constant 0 : index
    %c0_1 = arith.constant 0 : index
    %3 = vector.load %arg10[%c0, %c0_1] : memref<8x32xf32, #tpu.memory_space<vmem>>, vector<8x32xf32>
    %c0_2 = arith.constant 0 : index
    %c0_3 = arith.constant 0 : index
    %c0_4 = arith.constant 0 : index
    %4 = vector.load %arg7[%c0_2, %c0_3, %c0_4] : memref<1x8x128xf32, #tpu.memory_space<vmem>>, vector<1x8x128xf32>
    %5 = vector.shape_cast %4 : vector<1x8x128xf32> to vector<8x128xf32>
    %6 = vector.extract_strided_slice %5 {offsets = [0, 0], sizes = [1, 32], strides = [1, 1]} : vector<8x128xf32> to vector<1x32xf32>
    %7 = vector.extract_strided_slice %5 {offsets = [1, 0], sizes = [1, 32], strides = [1, 1]} : vector<8x128xf32> to vector<1x32xf32>
    %8 = vector.extract_strided_slice %5 {offsets = [2, 0], sizes = [1, 32], strides = [1, 1]} : vector<8x128xf32> to vector<1x32xf32>
    %9 = vector.extract_strided_slice %5 {offsets = [3, 0], sizes = [1, 32], strides = [1, 1]} : vector<8x128xf32> to vector<1x32xf32>
    %10 = vector.extract_strided_slice %5 {offsets = [4, 0], sizes = [1, 32], strides = [1, 1]} : vector<8x128xf32> to vector<1x32xf32>
    %11 = vector.extract_strided_slice %5 {offsets = [5, 0], sizes = [1, 128], strides = [1, 1]} : vector<8x128xf32> to vector<1x128xf32>
    %12 = vector.extract_strided_slice %5 {offsets = [6, 0], sizes = [1, 32], strides = [1, 1]} : vector<8x128xf32> to vector<1x32xf32>
    %cst = arith.constant dense<0.000000e+00> : vector<8xf32>
    %13 = vector.multi_reduction <add>, %3, %cst [1] : vector<8x32xf32> to vector<8xf32>
    %14 = vector.shape_cast %13 : vector<8xf32> to vector<8x1xf32>
    %cst_5 = arith.constant 3.200000e+01 : f32
    %15 = vector.broadcast %cst_5 : f32 to vector<8x1xf32>
    %16 = arith.divf %14, %15 : vector<8x1xf32>
    %17 = vector.broadcast %16 : vector<8x1xf32> to vector<8x32xf32>
    %18 = arith.subf %3, %17 : vector<8x32xf32>
    %19 = arith.mulf %18, %18 : vector<8x32xf32>
    %cst_6 = arith.constant dense<0.000000e+00> : vector<8xf32>
    %20 = vector.multi_reduction <add>, %19, %cst_6 [1] : vector<8x32xf32> to vector<8xf32>
    %21 = vector.shape_cast %20 : vector<8xf32> to vector<8x1xf32>
    %cst_7 = arith.constant 3.200000e+01 : f32
    %22 = vector.broadcast %cst_7 : f32 to vector<8x1xf32>
    %23 = arith.divf %21, %22 : vector<8x1xf32>
    %24 = vector.broadcast %16 : vector<8x1xf32> to vector<8x32xf32>
    %25 = arith.subf %3, %24 : vector<8x32xf32>
    %cst_8 = arith.constant 9.99999974E-6 : f32
    %26 = vector.broadcast %cst_8 : f32 to vector<8x1xf32>
    %27 = arith.addf %23, %26 : vector<8x1xf32>
    %28 = math.rsqrt %27 : vector<8x1xf32>
    %29 = vector.broadcast %28 : vector<8x1xf32> to vector<8x32xf32>
    %30 = arith.mulf %25, %29 : vector<8x32xf32>
    %31 = vector.broadcast %6 : vector<1x32xf32> to vector<8x32xf32>
    %32 = arith.mulf %30, %31 : vector<8x32xf32>
    %33 = vector.broadcast %7 : vector<1x32xf32> to vector<8x32xf32>
    %34 = arith.addf %32, %33 : vector<8x32xf32>
    %35 = arith.truncf %34 : vector<8x32xf32> to vector<8x32xbf16>
    %c0_9 = arith.constant 0 : index
    %c0_10 = arith.constant 0 : index
    %c0_11 = arith.constant 0 : index
    %36 = vector.load %arg3[%c0_9, %c0_10, %c0_11] : memref<1x32x96xbf16, #tpu.memory_space<vmem>>, vector<1x32x96xbf16>
    %37 = vector.shape_cast %36 : vector<1x32x96xbf16> to vector<32x96xbf16>
    %cst_12 = arith.constant dense<0.000000e+00> : vector<8x96xf32>
    %38 = tpu.matmul %35, %37, %cst_12 {dimension_numbers = #tpu.dot_dimension_numbers<[1], [0], [0], [1], [0, 0, 1, 1], [], []>} : vector<8x32xbf16>, vector<32x96xbf16>, vector<8x96xf32> -> vector<8x96xf32>
    %39 = tpu.iota {dimensions = array<i32: 0>} : vector<8x8xi32>
    %40 = tpu.iota {dimensions = array<i32: 1>} : vector<8x8xi32>
    %41 = arith.cmpi sgt, %40, %39 : vector<8x8xi32>
    %42 = vector.extract_strided_slice %38 {offsets = [0, 0], sizes = [8, 8], strides = [1, 1]} : vector<8x96xf32> to vector<8x8xf32>
    %43 = arith.truncf %42 : vector<8x8xf32> to vector<8x8xbf16>
    %44 = vector.extract_strided_slice %38 {offsets = [0, 32], sizes = [8, 8], strides = [1, 1]} : vector<8x96xf32> to vector<8x8xf32>
    %45 = arith.truncf %44 : vector<8x8xf32> to vector<8x8xbf16>
    %46 = vector.extract_strided_slice %38 {offsets = [0, 64], sizes = [8, 8], strides = [1, 1]} : vector<8x96xf32> to vector<8x8xf32>
    %47 = arith.truncf %46 : vector<8x8xf32> to vector<8x8xbf16>
    %cst_13 = arith.constant dense<0.000000e+00> : vector<8x8xf32>
    %48 = tpu.matmul %43, %45, %cst_13 {dimension_numbers = #tpu.dot_dimension_numbers<[1], [1], [0], [0], [0, 0, 1, 0], [], []>} : vector<8x8xbf16>, vector<8x8xbf16>, vector<8x8xf32> -> vector<8x8xf32>
    %cst_14 = arith.constant -1.000000e+30 : f32
    %49 = vector.broadcast %cst_14 : f32 to vector<8x8xf32>
    %50 = arith.select %41, %49, %48 : vector<8x8xi1>, vector<8x8xf32>
    %cst_15 = arith.constant dense<0xFF800000> : vector<8xf32>
    %51 = vector.multi_reduction <maximumf>, %50, %cst_15 [1] : vector<8x8xf32> to vector<8xf32>
    %52 = vector.shape_cast %51 : vector<8xf32> to vector<8x1xf32>
    %53 = vector.broadcast %52 : vector<8x1xf32> to vector<8x8xf32>
    %54 = arith.subf %50, %53 : vector<8x8xf32>
    %55 = math.exp %54 : vector<8x8xf32>
    %cst_16 = arith.constant dense<0.000000e+00> : vector<8xf32>
    %56 = vector.multi_reduction <add>, %55, %cst_16 [1] : vector<8x8xf32> to vector<8xf32>
    %57 = vector.shape_cast %56 : vector<8xf32> to vector<8x1xf32>
    %58 = tpu.reciprocal %57 {approx = true} : vector<8x1xf32> -> vector<8x1xf32>
    %59 = vector.broadcast %58 : vector<8x1xf32> to vector<8x8xf32>
    %60 = arith.mulf %55, %59 : vector<8x8xf32>
    %61 = arith.truncf %60 : vector<8x8xf32> to vector<8x8xbf16>
    %cst_17 = arith.constant dense<0.000000e+00> : vector<8x8xf32>
    %62 = tpu.matmul %61, %47, %cst_17 {dimension_numbers = #tpu.dot_dimension_numbers<[1], [0], [0], [1], [0, 0, 1, 1], [], []>} : vector<8x8xbf16>, vector<8x8xbf16>, vector<8x8xf32> -> vector<8x8xf32>
    %63 = arith.truncf %62 : vector<8x8xf32> to vector<8x8xbf16>
    %c0_18 = arith.constant 0 : index
    %c0_19 = arith.constant 0 : index
    %64 = vector.load %arg11[%c0_18, %c0_19] : memref<8x32xbf16, #tpu.memory_space<vmem>>, vector<8x8xbf16>
    tpu.vector_store %arg11[%c0_18, %c0_19], %63 {strides = array<i32>} : memref<8x32xbf16, #tpu.memory_space<vmem>>, vector<8x8xbf16>,
    %65 = vector.extract_strided_slice %38 {offsets = [0, 8], sizes = [8, 8], strides = [1, 1]} : vector<8x96xf32> to vector<8x8xf32>
    %66 = arith.truncf %65 : vector<8x8xf32> to vector<8x8xbf16>
    %67 = vector.extract_strided_slice %38 {offsets = [0, 40], sizes = [8, 8], strides = [1, 1]} : vector<8x96xf32> to vector<8x8xf32>
    %68 = arith.truncf %67 : vector<8x8xf32> to vector<8x8xbf16>
    %69 = vector.extract_strided_slice %38 {offsets = [0, 72], sizes = [8, 8], strides = [1, 1]} : vector<8x96xf32> to vector<8x8xf32>
    %70 = arith.truncf %69 : vector<8x8xf32> to vector<8x8xbf16>
    %cst_20 = arith.constant dense<0.000000e+00> : vector<8x8xf32>
    %71 = tpu.matmul %66, %68, %cst_20 {dimension_numbers = #tpu.dot_dimension_numbers<[1], [1], [0], [0], [0, 0, 1, 0], [], []>} : vector<8x8xbf16>, vector<8x8xbf16>, vector<8x8xf32> -> vector<8x8xf32>
    %cst_21 = arith.constant -1.000000e+30 : f32
    %72 = vector.broadcast %cst_21 : f32 to vector<8x8xf32>
    %73 = arith.select %41, %72, %71 : vector<8x8xi1>, vector<8x8xf32>
    %cst_22 = arith.constant dense<0xFF800000> : vector<8xf32>
    %74 = vector.multi_reduction <maximumf>, %73, %cst_22 [1] : vector<8x8xf32> to vector<8xf32>
    %75 = vector.shape_cast %74 : vector<8xf32> to vector<8x1xf32>
    %76 = vector.broadcast %75 : vector<8x1xf32> to vector<8x8xf32>
    %77 = arith.subf %73, %76 : vector<8x8xf32>
    %78 = math.exp %77 : vector<8x8xf32>
    %cst_23 = arith.constant dense<0.000000e+00> : vector<8xf32>
    %79 = vector.multi_reduction <add>, %78, %cst_23 [1] : vector<8x8xf32> to vector<8xf32>
    %80 = vector.shape_cast %79 : vector<8xf32> to vector<8x1xf32>
    %81 = tpu.reciprocal %80 {approx = true} : vector<8x1xf32> -> vector<8x1xf32>
    %82 = vector.broadcast %81 : vector<8x1xf32> to vector<8x8xf32>
    %83 = arith.mulf %78, %82 : vector<8x8xf32>
    %84 = arith.truncf %83 : vector<8x8xf32> to vector<8x8xbf16>
    %cst_24 = arith.constant dense<0.000000e+00> : vector<8x8xf32>
    %85 = tpu.matmul %84, %70, %cst_24 {dimension_numbers = #tpu.dot_dimension_numbers<[1], [0], [0], [1], [0, 0, 1, 1], [], []>} : vector<8x8xbf16>, vector<8x8xbf16>, vector<8x8xf32> -> vector<8x8xf32>
    %86 = arith.truncf %85 : vector<8x8xf32> to vector<8x8xbf16>
    %c0_25 = arith.constant 0 : index
    %c8 = arith.constant 8 : index
    %87 = vector.load %arg11[%c0_25, %c8] : memref<8x32xbf16, #tpu.memory_space<vmem>>, vector<8x8xbf16>
    tpu.vector_store %arg11[%c0_25, %c8], %86 {strides = array<i32>} : memref<8x32xbf16, #tpu.memory_space<vmem>>, vector<8x8xbf16>,
    %88 = vector.extract_strided_slice %38 {offsets = [0, 16], sizes = [8, 8], strides = [1, 1]} : vector<8x96xf32> to vector<8x8xf32>
    %89 = arith.truncf %88 : vector<8x8xf32> to vector<8x8xbf16>
    %90 = vector.extract_strided_slice %38 {offsets = [0, 48], sizes = [8, 8], strides = [1, 1]} : vector<8x96xf32> to vector<8x8xf32>
    %91 = arith.truncf %90 : vector<8x8xf32> to vector<8x8xbf16>
    %92 = vector.extract_strided_slice %38 {offsets = [0, 80], sizes = [8, 8], strides = [1, 1]} : vector<8x96xf32> to vector<8x8xf32>
    %93 = arith.truncf %92 : vector<8x8xf32> to vector<8x8xbf16>
    %cst_26 = arith.constant dense<0.000000e+00> : vector<8x8xf32>
    %94 = tpu.matmul %89, %91, %cst_26 {dimension_numbers = #tpu.dot_dimension_numbers<[1], [1], [0], [0], [0, 0, 1, 0], [], []>} : vector<8x8xbf16>, vector<8x8xbf16>, vector<8x8xf32> -> vector<8x8xf32>
    %cst_27 = arith.constant -1.000000e+30 : f32
    %95 = vector.broadcast %cst_27 : f32 to vector<8x8xf32>
    %96 = arith.select %41, %95, %94 : vector<8x8xi1>, vector<8x8xf32>
    %cst_28 = arith.constant dense<0xFF800000> : vector<8xf32>
    %97 = vector.multi_reduction <maximumf>, %96, %cst_28 [1] : vector<8x8xf32> to vector<8xf32>
    %98 = vector.shape_cast %97 : vector<8xf32> to vector<8x1xf32>
    %99 = vector.broadcast %98 : vector<8x1xf32> to vector<8x8xf32>
    %100 = arith.subf %96, %99 : vector<8x8xf32>
    %101 = math.exp %100 : vector<8x8xf32>
    %cst_29 = arith.constant dense<0.000000e+00> : vector<8xf32>
    %102 = vector.multi_reduction <add>, %101, %cst_29 [1] : vector<8x8xf32> to vector<8xf32>
    %103 = vector.shape_cast %102 : vector<8xf32> to vector<8x1xf32>
    %104 = tpu.reciprocal %103 {approx = true} : vector<8x1xf32> -> vector<8x1xf32>
    %105 = vector.broadcast %104 : vector<8x1xf32> to vector<8x8xf32>
    %106 = arith.mulf %101, %105 : vector<8x8xf32>
    %107 = arith.truncf %106 : vector<8x8xf32> to vector<8x8xbf16>
    %cst_30 = arith.constant dense<0.000000e+00> : vector<8x8xf32>
    %108 = tpu.matmul %107, %93, %cst_30 {dimension_numbers = #tpu.dot_dimension_numbers<[1], [0], [0], [1], [0, 0, 1, 1], [], []>} : vector<8x8xbf16>, vector<8x8xbf16>, vector<8x8xf32> -> vector<8x8xf32>
    %109 = arith.truncf %108 : vector<8x8xf32> to vector<8x8xbf16>
    %c0_31 = arith.constant 0 : index
    %c16 = arith.constant 16 : index
    %110 = vector.load %arg11[%c0_31, %c16] : memref<8x32xbf16, #tpu.memory_space<vmem>>, vector<8x8xbf16>
    tpu.vector_store %arg11[%c0_31, %c16], %109 {strides = array<i32>} : memref<8x32xbf16, #tpu.memory_space<vmem>>, vector<8x8xbf16>,
    %111 = vector.extract_strided_slice %38 {offsets = [0, 24], sizes = [8, 8], strides = [1, 1]} : vector<8x96xf32> to vector<8x8xf32>
    %112 = arith.truncf %111 : vector<8x8xf32> to vector<8x8xbf16>
    %113 = vector.extract_strided_slice %38 {offsets = [0, 56], sizes = [8, 8], strides = [1, 1]} : vector<8x96xf32> to vector<8x8xf32>
    %114 = arith.truncf %113 : vector<8x8xf32> to vector<8x8xbf16>
    %115 = vector.extract_strided_slice %38 {offsets = [0, 88], sizes = [8, 8], strides = [1, 1]} : vector<8x96xf32> to vector<8x8xf32>
    %116 = arith.truncf %115 : vector<8x8xf32> to vector<8x8xbf16>
    %cst_32 = arith.constant dense<0.000000e+00> : vector<8x8xf32>
    %117 = tpu.matmul %112, %114, %cst_32 {dimension_numbers = #tpu.dot_dimension_numbers<[1], [1], [0], [0], [0, 0, 1, 0], [], []>} : vector<8x8xbf16>, vector<8x8xbf16>, vector<8x8xf32> -> vector<8x8xf32>
    %cst_33 = arith.constant -1.000000e+30 : f32
    %118 = vector.broadcast %cst_33 : f32 to vector<8x8xf32>
    %119 = arith.select %41, %118, %117 : vector<8x8xi1>, vector<8x8xf32>
    %cst_34 = arith.constant dense<0xFF800000> : vector<8xf32>
    %120 = vector.multi_reduction <maximumf>, %119, %cst_34 [1] : vector<8x8xf32> to vector<8xf32>
    %121 = vector.shape_cast %120 : vector<8xf32> to vector<8x1xf32>
    %122 = vector.broadcast %121 : vector<8x1xf32> to vector<8x8xf32>
    %123 = arith.subf %119, %122 : vector<8x8xf32>
    %124 = math.exp %123 : vector<8x8xf32>
    %cst_35 = arith.constant dense<0.000000e+00> : vector<8xf32>
    %125 = vector.multi_reduction <add>, %124, %cst_35 [1] : vector<8x8xf32> to vector<8xf32>
    %126 = vector.shape_cast %125 : vector<8xf32> to vector<8x1xf32>
    %127 = tpu.reciprocal %126 {approx = true} : vector<8x1xf32> -> vector<8x1xf32>
    %128 = vector.broadcast %127 : vector<8x1xf32> to vector<8x8xf32>
    %129 = arith.mulf %124, %128 : vector<8x8xf32>
    %130 = arith.truncf %129 : vector<8x8xf32> to vector<8x8xbf16>
    %cst_36 = arith.constant dense<0.000000e+00> : vector<8x8xf32>
    %131 = tpu.matmul %130, %116, %cst_36 {dimension_numbers = #tpu.dot_dimension_numbers<[1], [0], [0], [1], [0, 0, 1, 1], [], []>} : vector<8x8xbf16>, vector<8x8xbf16>, vector<8x8xf32> -> vector<8x8xf32>
    %132 = arith.truncf %131 : vector<8x8xf32> to vector<8x8xbf16>
    %c0_37 = arith.constant 0 : index
    %c24 = arith.constant 24 : index
    %133 = vector.load %arg11[%c0_37, %c24] : memref<8x32xbf16, #tpu.memory_space<vmem>>, vector<8x8xbf16>
    tpu.vector_store %arg11[%c0_37, %c24], %132 {strides = array<i32>} : memref<8x32xbf16, #tpu.memory_space<vmem>>, vector<8x8xbf16>,
    %c0_38 = arith.constant 0 : index
    %c0_39 = arith.constant 0 : index
    %134 = vector.load %arg11[%c0_38, %c0_39] : memref<8x32xbf16, #tpu.memory_space<vmem>>, vector<8x32xbf16>
    %c0_40 = arith.constant 0 : index
    %c0_41 = arith.constant 0 : index
    %c0_42 = arith.constant 0 : index
    %135 = vector.load %arg4[%c0_40, %c0_41, %c0_42] : memref<1x32x32xbf16, #tpu.memory_space<vmem>>, vector<1x32x32xbf16>
    %136 = vector.shape_cast %135 : vector<1x32x32xbf16> to vector<32x32xbf16>
    %cst_43 = arith.constant dense<0.000000e+00> : vector<8x32xf32>
    %137 = tpu.matmul %134, %136, %cst_43 {dimension_numbers = #tpu.dot_dimension_numbers<[1], [0], [0], [1], [0, 0, 1, 1], [], []>} : vector<8x32xbf16>, vector<32x32xbf16>, vector<8x32xf32> -> vector<8x32xf32>
    %138 = vector.broadcast %8 : vector<1x32xf32> to vector<8x32xf32>
    %139 = arith.addf %137, %138 : vector<8x32xf32>
    %140 = arith.addf %3, %139 : vector<8x32xf32>
    %cst_44 = arith.constant dense<0.000000e+00> : vector<8xf32>
    %141 = vector.multi_reduction <add>, %140, %cst_44 [1] : vector<8x32xf32> to vector<8xf32>
    %142 = vector.shape_cast %141 : vector<8xf32> to vector<8x1xf32>
    %cst_45 = arith.constant 3.200000e+01 : f32
    %143 = vector.broadcast %cst_45 : f32 to vector<8x1xf32>
    %144 = arith.divf %142, %143 : vector<8x1xf32>
    %145 = vector.broadcast %144 : vector<8x1xf32> to vector<8x32xf32>
    %146 = arith.subf %140, %145 : vector<8x32xf32>
    %147 = arith.mulf %146, %146 : vector<8x32xf32>
    %cst_46 = arith.constant dense<0.000000e+00> : vector<8xf32>
    %148 = vector.multi_reduction <add>, %147, %cst_46 [1] : vector<8x32xf32> to vector<8xf32>
    %149 = vector.shape_cast %148 : vector<8xf32> to vector<8x1xf32>
    %cst_47 = arith.constant 3.200000e+01 : f32
    %150 = vector.broadcast %cst_47 : f32 to vector<8x1xf32>
    %151 = arith.divf %149, %150 : vector<8x1xf32>
    %152 = vector.broadcast %144 : vector<8x1xf32> to vector<8x32xf32>
    %153 = arith.subf %140, %152 : vector<8x32xf32>
    %cst_48 = arith.constant 9.99999974E-6 : f32
    %154 = vector.broadcast %cst_48 : f32 to vector<8x1xf32>
    %155 = arith.addf %151, %154 : vector<8x1xf32>
    %156 = math.rsqrt %155 : vector<8x1xf32>
    %157 = vector.broadcast %156 : vector<8x1xf32> to vector<8x32xf32>
    %158 = arith.mulf %153, %157 : vector<8x32xf32>
    %159 = vector.broadcast %9 : vector<1x32xf32> to vector<8x32xf32>
    %160 = arith.mulf %158, %159 : vector<8x32xf32>
    %161 = vector.broadcast %10 : vector<1x32xf32> to vector<8x32xf32>
    %162 = arith.addf %160, %161 : vector<8x32xf32>
    %163 = arith.truncf %162 : vector<8x32xf32> to vector<8x32xbf16>
    %c0_49 = arith.constant 0 : index
    %c0_50 = arith.constant 0 : index
    %c0_51 = arith.constant 0 : index
    %164 = vector.load %arg5[%c0_49, %c0_50, %c0_51] : memref<1x32x128xbf16, #tpu.memory_space<vmem>>, vector<1x32x128xbf16>
    %165 = vector.shape_cast %164 : vector<1x32x128xbf16> to vector<32x128xbf16>
    %cst_52 = arith.constant dense<0.000000e+00> : vector<8x128xf32>
    %166 = tpu.matmul %163, %165, %cst_52 {dimension_numbers = #tpu.dot_dimension_numbers<[1], [0], [0], [1], [0, 0, 1, 1], [], []>} : vector<8x32xbf16>, vector<32x128xbf16>, vector<8x128xf32> -> vector<8x128xf32>
    %167 = vector.broadcast %11 : vector<1x128xf32> to vector<8x128xf32>
    %168 = arith.addf %166, %167 : vector<8x128xf32>
    %169 = arith.truncf %168 : vector<8x128xf32> to vector<8x128xbf16>
    %cst_53 = arith.constant 5.000000e-01 : bf16
    %170 = vector.broadcast %cst_53 : bf16 to vector<8x128xbf16>
    %171 = arith.mulf %170, %169 : vector<8x128xbf16>
    %cst_54 = arith.constant 4.467770e-02 : bf16
    %172 = vector.broadcast %cst_54 : bf16 to vector<8x128xbf16>
    %173 = arith.mulf %172, %169 : vector<8x128xbf16>
    %174 = arith.mulf %173, %169 : vector<8x128xbf16>
    %175 = arith.mulf %174, %169 : vector<8x128xbf16>
    %176 = arith.addf %169, %175 : vector<8x128xbf16>
    %cst_55 = arith.constant 7.968750e-01 : bf16
    %177 = vector.broadcast %cst_55 : bf16 to vector<8x128xbf16>
    %178 = arith.mulf %177, %176 : vector<8x128xbf16>
    %179 = math.tanh %178 : vector<8x128xbf16>
    %cst_56 = arith.constant 1.000000e+00 : bf16
    %180 = vector.broadcast %cst_56 : bf16 to vector<8x128xbf16>
    %181 = arith.addf %180, %179 : vector<8x128xbf16>
    %182 = arith.mulf %171, %181 : vector<8x128xbf16>
    %c0_57 = arith.constant 0 : index
    %c0_58 = arith.constant 0 : index
    %c0_59 = arith.constant 0 : index
    %183 = vector.load %arg6[%c0_57, %c0_58, %c0_59] : memref<1x128x32xbf16, #tpu.memory_space<vmem>>, vector<1x128x32xbf16>
    %184 = vector.shape_cast %183 : vector<1x128x32xbf16> to vector<128x32xbf16>
    %cst_60 = arith.constant dense<0.000000e+00> : vector<8x32xf32>
    %185 = tpu.matmul %182, %184, %cst_60 {dimension_numbers = #tpu.dot_dimension_numbers<[1], [0], [0], [1], [0, 0, 1, 1], [], []>} : vector<8x128xbf16>, vector<128x32xbf16>, vector<8x32xf32> -> vector<8x32xf32>
    %186 = vector.broadcast %12 : vector<1x32xf32> to vector<8x32xf32>
    %187 = arith.addf %185, %186 : vector<8x32xf32>
    %188 = arith.addf %140, %187 : vector<8x32xf32>
    %c0_61 = arith.constant 0 : index
    %c0_62 = arith.constant 0 : index
    %189 = vector.load %arg10[%c0_61, %c0_62] : memref<8x32xf32, #tpu.memory_space<vmem>>, vector<8x32xf32>
    tpu.vector_store %arg10[%c0_61, %c0_62], %188 {strides = array<i32>} : memref<8x32xf32, #tpu.memory_space<vmem>>, vector<8x32xf32>,
    %c1_i32 = arith.constant 1 : i32
    %190 = arith.cmpi eq, %arg1, %c1_i32 : i32
    %191 = arith.extui %190 : i1 to i32
    %c0_i32_63 = arith.constant 0 : i32
    %192 = arith.cmpi ne, %191, %c0_i32_63 : i32
    scf.if %192 {
      %c0_64 = arith.constant 0 : index
      %c0_65 = arith.constant 0 : index
      %193 = vector.load %arg8[%c0_64, %c0_65] : memref<2x32xf32, #tpu.memory_space<vmem>>, vector<1x32xf32>
      %c1 = arith.constant 1 : index
      %c0_66 = arith.constant 0 : index
      %194 = vector.load %arg8[%c1, %c0_66] : memref<2x32xf32, #tpu.memory_space<vmem>>, vector<1x32xf32>
      %cst_67 = arith.constant dense<0.000000e+00> : vector<8xf32>
      %195 = vector.multi_reduction <add>, %188, %cst_67 [1] : vector<8x32xf32> to vector<8xf32>
      %196 = vector.shape_cast %195 : vector<8xf32> to vector<8x1xf32>
      %cst_68 = arith.constant 3.200000e+01 : f32
      %197 = vector.broadcast %cst_68 : f32 to vector<8x1xf32>
      %198 = arith.divf %196, %197 : vector<8x1xf32>
      %199 = vector.broadcast %198 : vector<8x1xf32> to vector<8x32xf32>
      %200 = arith.subf %188, %199 : vector<8x32xf32>
      %201 = arith.mulf %200, %200 : vector<8x32xf32>
      %cst_69 = arith.constant dense<0.000000e+00> : vector<8xf32>
      %202 = vector.multi_reduction <add>, %201, %cst_69 [1] : vector<8x32xf32> to vector<8xf32>
      %203 = vector.shape_cast %202 : vector<8xf32> to vector<8x1xf32>
      %cst_70 = arith.constant 3.200000e+01 : f32
      %204 = vector.broadcast %cst_70 : f32 to vector<8x1xf32>
      %205 = arith.divf %203, %204 : vector<8x1xf32>
      %206 = vector.broadcast %198 : vector<8x1xf32> to vector<8x32xf32>
      %207 = arith.subf %188, %206 : vector<8x32xf32>
      %cst_71 = arith.constant 9.99999974E-6 : f32
      %208 = vector.broadcast %cst_71 : f32 to vector<8x1xf32>
      %209 = arith.addf %205, %208 : vector<8x1xf32>
      %210 = math.rsqrt %209 : vector<8x1xf32>
      %211 = vector.broadcast %210 : vector<8x1xf32> to vector<8x32xf32>
      %212 = arith.mulf %207, %211 : vector<8x32xf32>
      %213 = vector.broadcast %193 : vector<1x32xf32> to vector<8x32xf32>
      %214 = arith.mulf %212, %213 : vector<8x32xf32>
      %215 = vector.broadcast %194 : vector<1x32xf32> to vector<8x32xf32>
      %216 = arith.addf %214, %215 : vector<8x32xf32>
      %217 = arith.truncf %216 : vector<8x32xf32> to vector<8x32xbf16>
      %c0_72 = arith.constant 0 : index
      %c0_73 = arith.constant 0 : index
      %218 = vector.load %arg9[%c0_72, %c0_73] : memref<8x32xbf16, #tpu.memory_space<vmem>>, vector<8x32xbf16>
      tpu.vector_store %arg9[%c0_72, %c0_73], %217 {strides = array<i32>} : memref<8x32xbf16, #tpu.memory_space<vmem>>, vector<8x32xbf16>,
    } else {
    }
    return
  }
  func.func @transform_0(%arg0: i32, %arg1: i32) -> (i32, i32) {
    %c0_i32 = arith.constant 0 : i32
    %c0_i32_0 = arith.constant 0 : i32
    return %arg0, %c0_i32 : i32, i32
  }
  func.func @transform_1(%arg0: i32, %arg1: i32) -> (i32, i32, i32) {
    %c0_i32 = arith.constant 0 : i32
    %c0_i32_0 = arith.constant 0 : i32
    %c0_i32_1 = arith.constant 0 : i32
    return %arg1, %c0_i32, %c0_i32_0 : i32, i32, i32
  }
  func.func @transform_2(%arg0: i32, %arg1: i32) -> (i32, i32, i32) {
    %c0_i32 = arith.constant 0 : i32
    %c0_i32_0 = arith.constant 0 : i32
    %c0_i32_1 = arith.constant 0 : i32
    return %arg1, %c0_i32, %c0_i32_0 : i32, i32, i32
  }
  func.func @transform_3(%arg0: i32, %arg1: i32) -> (i32, i32, i32) {
    %c0_i32 = arith.constant 0 : i32
    %c0_i32_0 = arith.constant 0 : i32
    %c0_i32_1 = arith.constant 0 : i32
    return %arg1, %c0_i32, %c0_i32_0 : i32, i32, i32
  }
  func.func @transform_4(%arg0: i32, %arg1: i32) -> (i32, i32, i32) {
    %c0_i32 = arith.constant 0 : i32
    %c0_i32_0 = arith.constant 0 : i32
    %c0_i32_1 = arith.constant 0 : i32
    return %arg1, %c0_i32, %c0_i32_0 : i32, i32, i32
  }
  func.func @transform_5(%arg0: i32, %arg1: i32) -> (i32, i32, i32) {
    %c0_i32 = arith.constant 0 : i32
    %c0_i32_0 = arith.constant 0 : i32
    %c0_i32_1 = arith.constant 0 : i32
    return %arg1, %c0_i32, %c0_i32_0 : i32, i32, i32
  }
  func.func @transform_6(%arg0: i32, %arg1: i32) -> (i32, i32) {
    %c0_i32 = arith.constant 0 : i32
    %c0_i32_0 = arith.constant 0 : i32
    %c0_i32_1 = arith.constant 0 : i32
    return %c0_i32, %c0_i32_0 : i32, i32
  }
  func.func @transform_7(%arg0: i32, %arg1: i32) -> (i32, i32) {
    %c0_i32 = arith.constant 0 : i32
    %c0_i32_0 = arith.constant 0 : i32
    return %arg0, %c0_i32 : i32, i32
  }
}

</mosaic_0001>

<llo_original>
// kernel: gpt_forward.3
$region0: #{gpt_forward.3}
  #allocation0 [shape = 'u32[]', space=smem, size = 0x4, offset = 0x4, fixed_abs, tag = 'smem constant byte address 0x4 - core index']
  #allocation1 [shape = 'u32[144,128]{1,0:T(1,128)}', space=vmem, size = 0x12000, scoped, tag = 'internal scratch']
  %s0 = inlined_call_operand.hbm [shape: bf16[16,32], index: 0, kind: input, shape index: {}]
  %s1 = inlined_call_operand.hbm [shape: bf16[32,256], index: 1, kind: input, shape index: {}]
  %s2 = inlined_call_operand.hbm [shape: bf16[16,256], index: 2, kind: output, shape index: {}]
  %s3 = sld [smem:[#allocation0]]
  $region26: #{gpt_forward.3} parent=0
    _
  %s5 = ssub.s32 1, %s3
  %s6 = scalar_select 0, %s5, %s3
  $region1: #{gpt_forward.3} parent=0
    #allocation2 [shape = 'u8[4096]{0}', space=vmem, size = 0x1000, scoped, tag = 'input window, operand 0, single buffered']
    #allocation3 [shape = 's32[1]{0}', space=sflag, size = 0x4, scoped, tag = 'scoped memory for gpt_forward.3']
    #allocation4 [shape = 's32[1]{0}', space=sflag, size = 0x4, scoped, tag = 'scoped memory for gpt_forward.3']
    #allocation5 [shape = 'u8[16384]{0}', space=vmem, size = 0x4000, scoped, tag = 'input window, operand 1, single buffered']
    #allocation6 [shape = 's32[1]{0}', space=sflag, size = 0x4, scoped, tag = 'scoped memory for gpt_forward.3']
    #allocation7 [shape = 'u8[8192]{0}', space=vmem, size = 0x2000, scoped, tag = 'output window, operand 0, single buffered']
    %7 = vsyncpa [#allocation3], 0
    %8 = vsyncpa [#allocation6], 0
    %9 = vsyncpa [#allocation4], 0
    // Predicated region
    $region2: #{gpt_forward.3} parent=1 // pred_check
      _
    $region3: #{gpt_forward.3} parent=1 // pred_check_branch
      %11 = sbr.rel (0) target = $region5
    $region4: #{gpt_forward.3} parent=1 // pred_region
      %s13 = ssub.s32 128, 128
      %14 = vsyncadd [#allocation3], %s13
      %s15 = sshll.u32 [#allocation2], 4
      %s16 = int_to_ptr.vmem [resolvable:$true] %s15
      %21 = dma.hbm_to_vmem [thread:$0]  %s0, 128, %s16, [#allocation3], 64, 64, 4
    $region5: #{gpt_forward.3} parent=1 // pred_fallthru
      _
    // Predicated region
    $region6: #{gpt_forward.3} parent=1 // pred_check
      _
    $region7: #{gpt_forward.3} parent=1 // pred_check_branch
      %23 = sbr.rel (0) target = $region9
    $region8: #{gpt_forward.3} parent=1 // pred_region
      %s25 = ssub.s32 512, 512
      %26 = vsyncadd [#allocation6], %s25
      %s27 = sshll.u32 [#allocation5], 4
      %s28 = int_to_ptr.vmem [resolvable:$true] %s27
      %33 = dma.hbm_to_vmem [thread:$0]  %s1, 512, %s28, [#allocation6], 128, 128, 8
    $region9: #{gpt_forward.3} parent=1 // pred_fallthru
      _
    // Predicated region
    $region10: #{gpt_forward.3} parent=1 // pred_check
      _
    $region11: #{gpt_forward.3} parent=1 // pred_check_branch
      %35 = sbr.rel (0) target = $region13
    $region12: #{gpt_forward.3} parent=1 // pred_region
      %36 = dma.done [#allocation3], 128
    $region13: #{gpt_forward.3} parent=1 // pred_fallthru
      _
    // Predicated region
    $region14: #{gpt_forward.3} parent=1 // pred_check
      _
    $region15: #{gpt_forward.3} parent=1 // pred_check_branch
      %38 = sbr.rel (0) target = $region17
    $region16: #{gpt_forward.3} parent=1 // pred_region
      %39 = dma.done [#allocation6], 512
    $region17: #{gpt_forward.3} parent=1 // pred_fallthru
      _
    %v41 = vld [vmem:[#allocation2] sm:$0xf]
    %v42 = vld [vmem:[#allocation2 + $0x4] sm:$0xf]
    %v43 = vld [vmem:[#allocation5] sm:$0xff]
    %v44 = vld [vmem:[#allocation5 + $0x8] sm:$0xff]
    %v45 = vld [vmem:[#allocation5 + $0x10] sm:$0xff]
    %v46 = vld [vmem:[#allocation5 + $0x18] sm:$0xff]
    %v49 = vunpack.c.l.b16 %v41
    %v50 = vunpack.c.l.b16 %v42
    %v51 = vpack.c.b16 %v50, %v49
    %v56 = vunpack.c.l.b16 %v43
    %v57 = vunpack.c.h.b16 %v43
    %v58 = vunpack.c.l.b16 %v44
    %v59 = vunpack.c.h.b16 %v44
    %v60 = vunpack.c.l.b16 %v45
    %v61 = vunpack.c.h.b16 %v45
    %v62 = vunpack.c.l.b16 %v46
    %v63 = vunpack.c.h.b16 %v46
    %v64 = vpack.c.b16 %v58, %v56
    %v65 = vpack.c.b16 %v59, %v57
    %v66 = vpack.c.b16 %v62, %v60
    %v67 = vpack.c.b16 %v63, %v61
    %vm72 = vcmask 261120
    %v74 = vsel %vm72, %v51, 0
    %76 = vmatprep.subr.bf16.mxu0 %v65
    %77 = vmatpush1.bf16.msra.mxu0 %v64
    %78 = vmatprep.subr.bf16.mxu0 %v67
    %79 = vmatpush1.bf16.msra.mxu0 %v66
    %80 = vmatprep.subr.bf16.mxu0 0
    %81 = vmatpush1.bf16.msra.mxu0 0
    %82 = vmatprep.subr.bf16.mxu0 0
    %83 = vmatpush1.bf16.msra.mxu0 0
    %84 = vmatprep.subr.bf16.mxu0 0
    %85 = vmatpush1.bf16.msra.mxu0 0
    %86 = vmatprep.subr.bf16.mxu0 0
    %87 = vmatpush1.bf16.msra.mxu0 0
    %88 = vmatprep.subr.bf16.mxu0 0
    %89 = vmatpush1.bf16.msra.mxu0 0
    %90 = vmatprep.subr.bf16.mxu0 0
    %91 = vmatpush1.bf16.msra.mxu0 0
    %92 = vmatprep.subr.bf16.mxu0 0
    %93 = vmatpush1.bf16.msra.mxu0 0
    %94 = vmatprep.subr.bf16.mxu0 0
    %95 = vmatpush1.bf16.msra.mxu0 0
    %96 = vmatprep.subr.bf16.mxu0 0
    %97 = vmatpush1.bf16.msra.mxu0 0
    %98 = vmatprep.subr.bf16.mxu0 0
    %99 = vmatpush1.bf16.msra.mxu0 0
    %100 = vmatprep.subr.bf16.mxu0 0
    %101 = vmatpush1.bf16.msra.mxu0 0
    %102 = vmatprep.subr.bf16.mxu0 0
    %103 = vmatpush1.bf16.msra.mxu0 0
    %104 = vmatprep.subr.bf16.mxu0 0
    %105 = vmatpush1.bf16.msra.mxu0 0
    %106 = vmatprep.subr.bf16.mxu0 0
    %107 = vmatpush1.bf16.msra.mxu0 0
    %108 = vmatprep.mubr.bf16.mxu0 0
    %109 = vmatmul.mubr.bf16.gmra.mrb[0].mxu0 %v74
    %v110 = vpop.f32.mrb[0].mxu0
    %v111 = vadd.f32 0.0, %v110
    %v112 = vpop.f32.mrb[0].mxu0
    %v113 = vadd.f32 0.0, %v112
    %v114 = vpop.f32.mrb[0].mxu0
    %v115 = vadd.f32 0.0, %v114
    %v116 = vpop.f32.mrb[0].mxu0
    %v117 = vadd.f32 0.0, %v116
    %118 = vdwg.mxu0
    %v119 = vpack.c.bf16 %v115, %v111
    %v120 = vpack.c.bf16 %v117, %v113
    %v123 = vunpack.c.l.b16 %v119
    %v124 = vunpack.c.l.b16 %v120
    %v125 = vunpack.c.h.b16 %v119
    %v126 = vunpack.c.h.b16 %v120
    %v127 = vpack.c.b16 %v124, %v123
    %v128 = vpack.c.b16 %v126, %v125
    %131 = vst [vmem:[#allocation7] sm:$0xff] %v127
    %132 = vst [vmem:[#allocation7 + $0x8] sm:$0xff] %v128
    // Predicated region
    $region18: #{gpt_forward.3} parent=1 // pred_check
      _
    $region19: #{gpt_forward.3} parent=1 // pred_check_branch
      %134 = sbr.rel (0) target = $region21
    $region20: #{gpt_forward.3} parent=1 // pred_region
      %s136 = ssub.s32 256, 256
      %137 = vsyncadd [#allocation4], %s136
      %s138 = sshll.u32 [#allocation7], 4
      %s139 = int_to_ptr.vmem [resolvable:$true] %s138
      %144 = dma.vmem_to_hbm [thread:$0]  %s139, 256, %s2, [#allocation4], 128, 128, 8
    $region21: #{gpt_forward.3} parent=1 // pred_fallthru
      _
    // Predicated region
    $region22: #{gpt_forward.3} parent=1 // pred_check
      _
    $region23: #{gpt_forward.3} parent=1 // pred_check_branch
      %146 = sbr.rel (0) target = $region25
    $region24: #{gpt_forward.3} parent=1 // pred_region
      %147 = dma.done [#allocation4], 256
    $region25: #{gpt_forward.3} parent=1 // pred_fallthru
      _
    %148 = vsyncpa [#allocation3], 1
    %149 = vsyncpa [#allocation6], 1
    %150 = vsyncpa [#allocation4], 1

// kernel: gpt_forward.2
$region0: #{gpt_forward.2}
  #allocation0 [shape = 'u32[]', space=smem, size = 0x4, offset = 0x4, fixed_abs, tag = 'smem constant byte address 0x4 - core index']
  #allocation1 [shape = 'u32[144,128]{1,0:T(1,128)}', space=vmem, size = 0x12000, scoped, tag = 'internal scratch']
  #allocation2 [shape = 'f32[8,32]{1,0:T(8,128)}', space=vmem, size = 0x1000, scoped, tag = 'scratch operand']
  #allocation3 [shape = 'bf16[8,32]{1,0:T(8,128)(2,1)}', space=vmem, size = 0x800, scoped, tag = 'scratch operand']
  %s0 = inlined_call_operand.hbm [shape: bf16[16,32], index: 0, kind: input, shape index: {}]
  %s1 = inlined_call_operand.hbm [shape: bf16[2,32,96], index: 1, kind: input, shape index: {}]
  %s2 = inlined_call_operand.hbm [shape: bf16[2,32,32], index: 2, kind: input, shape index: {}]
  %s3 = inlined_call_operand.hbm [shape: bf16[2,32,128], index: 3, kind: input, shape index: {}]
  %s4 = inlined_call_operand.hbm [shape: bf16[2,128,32], index: 4, kind: input, shape index: {}]
  %s5 = inlined_call_operand.hbm [shape: f32[2,8,128], index: 5, kind: input, shape index: {}]
  %s6 = inlined_call_operand.hbm [shape: f32[2,32], index: 6, kind: input, shape index: {}]
  %s7 = inlined_call_operand.hbm [shape: bf16[16,32], index: 7, kind: output, shape index: {}]
  %s8 = sld [smem:[#allocation0]]
  $region97: #{gpt_forward.2} parent=0
    _
  %s10 = ssub.s32 1, %s8
  %s11 = scalar_select 0, %s10, %s8
  $region1: #{gpt_forward.2} parent=0
    #allocation4 [shape = 'u8[4096]{0}', space=vmem, size = 0x1000, scoped, tag = 'input window, operand 0']
    #allocation5 [shape = 's32[2]{0}', space=sflag, size = 0x8, scoped, tag = 'scoped memory for gpt_forward.2']
    #allocation6 [shape = 's32[2]{0}', space=sflag, size = 0x8, scoped, tag = 'scoped memory for gpt_forward.2']
    #allocation7 [shape = 'u8[16384]{0}', space=vmem, size = 0x4000, scoped, tag = 'input window, operand 1']
    #allocation8 [shape = 's32[2]{0}', space=sflag, size = 0x8, scoped, tag = 'scoped memory for gpt_forward.2']
    #allocation9 [shape = 'u8[16384]{0}', space=vmem, size = 0x4000, scoped, tag = 'input window, operand 2']
    #allocation10 [shape = 'u8[16384]{0}', space=vmem, size = 0x4000, scoped, tag = 'input window, operand 3']
    #allocation11 [shape = 's32[2]{0}', space=sflag, size = 0x8, scoped, tag = 'scoped memory for gpt_forward.2']
    #allocation12 [shape = 'u8[65536]{0}', space=vmem, size = 0x10000, scoped, tag = 'input window, operand 4']
    #allocation13 [shape = 'u8[8192]{0}', space=vmem, size = 0x2000, scoped, tag = 'input window, operand 5']
    #allocation14 [shape = 's32[2]{0}', space=sflag, size = 0x8, scoped, tag = 'scoped memory for gpt_forward.2']
    #allocation15 [shape = 'u8[1024]{0}', space=vmem, size = 0x400, scoped, tag = 'input window, operand 6, single buffered']
    #allocation16 [shape = 'u8[4096]{0}', space=vmem, size = 0x1000, scoped, tag = 'output window, operand 0']
    %12 = vsyncpa [#allocation5], 0
    %s13 = scalar_lea.sflag [#allocation5], 1
    %14 = vsyncpa %s13, 0
    %15 = vsyncpa [#allocation8], 0
    %s16 = scalar_lea.sflag [#allocation8], 1
    %17 = vsyncpa %s16, 0
    %18 = vsyncpa [#allocation11], 0
    %s19 = scalar_lea.sflag [#allocation11], 1
    %20 = vsyncpa %s19, 0
    %21 = vsyncpa [#allocation14], 0
    %s22 = scalar_lea.sflag [#allocation14], 1
    %23 = vsyncpa %s22, 0
    %24 = vsyncpa [#allocation6], 0
    %s25 = scalar_lea.sflag [#allocation6], 1
    %26 = vsyncpa %s25, 0
    loop: start=0, step=1, limit=6
    $region2: #{gpt_forward.2} parent=1 // loop_pre_header
      _
    $region3: #{gpt_forward.2} parent=1 // loop_header
      %s28 = sphi 0, %s32
      %p29 = scmp.ge.s32.totalorder %s28, 6
      %s35 = sphi 0, %s47
      %s36 = sphi 0, %s43
      %s37 = sphi 0, %s35
      %s38 = sphi 0, %s36
      %s39 = sphi 0, %s37
      %s40 = sphi 0, %s38
      %s50 = sphi 0, %s52
      %s53 = sphi 0, %s50
      %s54 = sphi 0, %s53
      %s70 = sphi 0, %s54
      %s76 = sphi 0, %s78
      %s79 = sphi 0, %s76
      %s80 = sphi 0, %s79
      %s96 = sphi 0, %s80
      %s102 = sphi 0, %s104
      %s105 = sphi 0, %s102
      %s106 = sphi 0, %s105
      %s122 = sphi 0, %s106
      %s128 = sphi 0, %s130
      %s131 = sphi 0, %s128
      %s132 = sphi 0, %s131
      %s148 = sphi 0, %s132
      %s154 = sphi 0, %s156
      %s157 = sphi 0, %s154
      %s158 = sphi 0, %s157
      %s174 = sphi 0, %s158
      %s180 = sphi 0, %s182
      %s183 = sphi 0, %s180
      %s184 = sphi 0, %s183
      %s200 = sphi 0, %s184
      %s204 = sphi 0, %s204
      %s206 = sphi 0, %s204
      %s207 = sphi 0, %s206
      %s221 = sphi 0, %s207
      %s227 = sphi 0, %s229
      %s230 = sphi 0, %s227
      %s231 = sphi 0, %s230
      %s247 = sphi 0, %s231
    $region4: #{gpt_forward.2} parent=1 // loop_header_branch
      %31 = sbr.rel (%p29) target = $region8
    $region5: #{gpt_forward.2} parent=1 // loop_body
      %s33 = ssub.s32 %s28, 1
      %s34 = ssub.s32 %s28, 2
      %s41 = sadd.s32 1, %s36
      %p42 = scmp.ge.s32.totalorder %s41, 2
      %s43 = scalar_select %p42, 0, %s41
      %s44 = sadd.s32 1, %s35
      %s45 = scalar_select %p42, %s44, %s35
      %p46 = scmp.ge.s32.totalorder %s45, 2
      %s47 = scalar_select %p46, 0, %s45
      %s48 = ssub.s32 %s35, %s47
      %p49 = scmp.eq.s32.totalorder %s48, 0
      %s51 = sadd.s32 %s50, 1
      %s52 = scalar_select %p49, %s50, %s51
      %p55 = pneg %p49
      %p56 = scmp.eq.s32.totalorder %s28, 3
      %p57 = por %p55, %p56
      %p58 = scmp.ne.s32.totalorder %s50, %s53
      %p59 = scmp.eq.s32.totalorder %s28, 0
      %p60 = por %p58, %p59
      %p61 = scmp.ne.s32.totalorder %s50, %s53
      %p62 = scmp.eq.s32.totalorder %s33, 3
      %p63 = por %p61, %p62
      %p64 = scmp.ne.s32.totalorder %s53, %s54
      %p65 = scmp.eq.s32.totalorder %s33, 0
      %p66 = por %p64, %p65
      %p67 = scmp.ne.s32.totalorder %s53, %s54
      %p68 = scmp.eq.s32.totalorder %s34, 3
      %p69 = por %p67, %p68
      %p71 = scmp.ne.s32.totalorder %s54, %s70
      %p72 = scmp.eq.s32.totalorder %s34, 0
      %p73 = por %p71, %p72
      %s74 = ssub.s32 %s36, %s43
      %p75 = scmp.eq.s32.totalorder %s74, 0
      %s77 = sadd.s32 %s76, 1
      %s78 = scalar_select %p75, %s76, %s77
      %p81 = pneg %p75
      %p82 = scmp.eq.s32.totalorder %s28, 3
      %p83 = por %p81, %p82
      %p84 = scmp.ne.s32.totalorder %s76, %s79
      %p85 = scmp.eq.s32.totalorder %s28, 0
      %p86 = por %p84, %p85
      %p87 = scmp.ne.s32.totalorder %s76, %s79
      %p88 = scmp.eq.s32.totalorder %s33, 3
      %p89 = por %p87, %p88
      %p90 = scmp.ne.s32.totalorder %s79, %s80
      %p91 = scmp.eq.s32.totalorder %s33, 0
      %p92 = por %p90, %p91
      %p93 = scmp.ne.s32.totalorder %s79, %s80
      %p94 = scmp.eq.s32.totalorder %s34, 3
      %p95 = por %p93, %p94
      %p97 = scmp.ne.s32.totalorder %s80, %s96
      %p98 = scmp.eq.s32.totalorder %s34, 0
      %p99 = por %p97, %p98
      %s100 = ssub.s32 %s36, %s43
      %p101 = scmp.eq.s32.totalorder %s100, 0
      %s103 = sadd.s32 %s102, 1
      %s104 = scalar_select %p101, %s102, %s103
      %p107 = pneg %p101
      %p108 = scmp.eq.s32.totalorder %s28, 3
      %p109 = por %p107, %p108
      %p110 = scmp.ne.s32.totalorder %s102, %s105
      %p111 = scmp.eq.s32.totalorder %s28, 0
      %p112 = por %p110, %p111
      %p113 = scmp.ne.s32.totalorder %s102, %s105
      %p114 = scmp.eq.s32.totalorder %s33, 3
      %p115 = por %p113, %p114
      %p116 = scmp.ne.s32.totalorder %s105, %s106
      %p117 = scmp.eq.s32.totalorder %s33, 0
      %p118 = por %p116, %p117
      %p119 = scmp.ne.s32.totalorder %s105, %s106
      %p120 = scmp.eq.s32.totalorder %s34, 3
      %p121 = por %p119, %p120
      %p123 = scmp.ne.s32.totalorder %s106, %s122
      %p124 = scmp.eq.s32.totalorder %s34, 0
      %p125 = por %p123, %p124
      %s126 = ssub.s32 %s36, %s43
      %p127 = scmp.eq.s32.totalorder %s126, 0
      %s129 = sadd.s32 %s128, 1
      %s130 = scalar_select %p127, %s128, %s129
      %p133 = pneg %p127
      %p134 = scmp.eq.s32.totalorder %s28, 3
      %p135 = por %p133, %p134
      %p136 = scmp.ne.s32.totalorder %s128, %s131
      %p137 = scmp.eq.s32.totalorder %s28, 0
      %p138 = por %p136, %p137
      %p139 = scmp.ne.s32.totalorder %s128, %s131
      %p140 = scmp.eq.s32.totalorder %s33, 3
      %p141 = por %p139, %p140
      %p142 = scmp.ne.s32.totalorder %s131, %s132
      %p143 = scmp.eq.s32.totalorder %s33, 0
      %p144 = por %p142, %p143
      %p145 = scmp.ne.s32.totalorder %s131, %s132
      %p146 = scmp.eq.s32.totalorder %s34, 3
      %p147 = por %p145, %p146
      %p149 = scmp.ne.s32.totalorder %s132, %s148
      %p150 = scmp.eq.s32.totalorder %s34, 0
      %p151 = por %p149, %p150
      %s152 = ssub.s32 %s36, %s43
      %p153 = scmp.eq.s32.totalorder %s152, 0
      %s155 = sadd.s32 %s154, 1
      %s156 = scalar_select %p153, %s154, %s155
      %p159 = pneg %p153
      %p160 = scmp.eq.s32.totalorder %s28, 3
      %p161 = por %p159, %p160
      %p162 = scmp.ne.s32.totalorder %s154, %s157
      %p163 = scmp.eq.s32.totalorder %s28, 0
      %p164 = por %p162, %p163
      %p165 = scmp.ne.s32.totalorder %s154, %s157
      %p166 = scmp.eq.s32.totalorder %s33, 3
      %p167 = por %p165, %p166
      %p168 = scmp.ne.s32.totalorder %s157, %s158
      %p169 = scmp.eq.s32.totalorder %s33, 0
      %p170 = por %p168, %p169
      %p171 = scmp.ne.s32.totalorder %s157, %s158
      %p172 = scmp.eq.s32.totalorder %s34, 3
      %p173 = por %p171, %p172
      %p175 = scmp.ne.s32.totalorder %s158, %s174
      %p176 = scmp.eq.s32.totalorder %s34, 0
      %p177 = por %p175, %p176
      %s178 = ssub.s32 %s36, %s43
      %p179 = scmp.eq.s32.totalorder %s178, 0
      %s181 = sadd.s32 %s180, 1
      %s182 = scalar_select %p179, %s180, %s181
      %p185 = pneg %p179
      %p186 = scmp.eq.s32.totalorder %s28, 3
      %p187 = por %p185, %p186
      %p188 = scmp.ne.s32.totalorder %s180, %s183
      %p189 = scmp.eq.s32.totalorder %s28, 0
      %p190 = por %p188, %p189
      %p191 = scmp.ne.s32.totalorder %s180, %s183
      %p192 = scmp.eq.s32.totalorder %s33, 3
      %p193 = por %p191, %p192
      %p194 = scmp.ne.s32.totalorder %s183, %s184
      %p195 = scmp.eq.s32.totalorder %s33, 0
      %p196 = por %p194, %p195
      %p197 = scmp.ne.s32.totalorder %s183, %s184
      %p198 = scmp.eq.s32.totalorder %s34, 3
      %p199 = por %p197, %p198
      %p201 = scmp.ne.s32.totalorder %s184, %s200
      %p202 = scmp.eq.s32.totalorder %s34, 0
      %p203 = por %p201, %p202
      %s205 = sadd.s32 %s204, 1
      %p208 = scmp.eq.s32.totalorder %s28, 3
      %p209 = scmp.ne.s32.totalorder %s204, %s206
      %p210 = scmp.eq.s32.totalorder %s28, 0
      %p211 = por %p209, %p210
      %p212 = scmp.ne.s32.totalorder %s204, %s206
      %p213 = scmp.eq.s32.totalorder %s33, 3
      %p214 = por %p212, %p213
      %p215 = scmp.ne.s32.totalorder %s206, %s207
      %p216 = scmp.eq.s32.totalorder %s33, 0
      %p217 = por %p215, %p216
      %p218 = scmp.ne.s32.totalorder %s206, %s207
      %p219 = scmp.eq.s32.totalorder %s34, 3
      %p220 = por %p218, %p219
      %p222 = scmp.ne.s32.totalorder %s207, %s221
      %p223 = scmp.eq.s32.totalorder %s34, 0
      %p224 = por %p222, %p223
      %s225 = ssub.s32 %s35, %s47
      %p226 = scmp.eq.s32.totalorder %s225, 0
      %s228 = sadd.s32 %s227, 1
      %s229 = scalar_select %p226, %s227, %s228
      %p232 = pneg %p226
      %p233 = scmp.eq.s32.totalorder %s28, 3
      %p234 = por %p232, %p233
      %p235 = scmp.ne.s32.totalorder %s227, %s230
      %p236 = scmp.eq.s32.totalorder %s28, 0
      %p237 = por %p235, %p236
      %p238 = scmp.ne.s32.totalorder %s227, %s230
      %p239 = scmp.eq.s32.totalorder %s33, 3
      %p240 = por %p238, %p239
      %p241 = scmp.ne.s32.totalorder %s230, %s231
      %p242 = scmp.eq.s32.totalorder %s33, 0
      %p243 = por %p241, %p242
      %p244 = scmp.ne.s32.totalorder %s230, %s231
      %p245 = scmp.eq.s32.totalorder %s34, 3
      %p246 = por %p244, %p245
      %p248 = scmp.ne.s32.totalorder %s231, %s247
      %p249 = scmp.eq.s32.totalorder %s34, 0
      %p250 = por %p248, %p249
      %p251 = scmp.le.s32.totalorder 1, %s28
      %p252 = scmp.lt.s32.totalorder %s28, 5
      %p253 = pnand %p251, %p252
      %p254 = pneg %p253
      // Predicated region
      $region9: #{gpt_forward.2} parent=5 // pred_check
        _
      $region10: #{gpt_forward.2} parent=5 // pred_check_branch
        %256 = sbr.rel (%p253) target = $region12
      $region11: #{gpt_forward.2} parent=5 // pred_region
        %s257 = ssub.s32 %s28, 1
        // Predicated region
        $region13: #{gpt_forward.2} parent=11 // pred_check
          %p258 = pneg %p217
        $region14: #{gpt_forward.2} parent=11 // pred_check_branch
          %260 = sbr.rel (%p258) target = $region16
        $region15: #{gpt_forward.2} parent=11 // pred_region
          %s262 = ssub.s32 32, 32
          %263 = vsyncadd [#allocation14], %s262
          %s265 = sshll.u32 [#allocation15], 4
          %s266 = int_to_ptr.vmem [resolvable:$true] %s265
          %268 = dma.hbm_to_vmem [thread:$0]  %s6, 32, %s266, [#allocation14]
        $region16: #{gpt_forward.2} parent=11 // pred_fallthru
          _
      $region12: #{gpt_forward.2} parent=5 // pred_fallthru
        _
      %p269 = scmp.lt.s32.totalorder %s28, 4
      // Predicated region
      $region17: #{gpt_forward.2} parent=5 // pred_check
        %p270 = pneg %p269
      $region18: #{gpt_forward.2} parent=5 // pred_check_branch
        %272 = sbr.rel (%p270) target = $region20
      $region19: #{gpt_forward.2} parent=5 // pred_region
        // Predicated region
        $region21: #{gpt_forward.2} parent=19 // pred_check
          %p273 = pneg %p60
        $region22: #{gpt_forward.2} parent=19 // pred_check_branch
          %275 = sbr.rel (%p273) target = $region24
        $region23: #{gpt_forward.2} parent=19 // pred_region
          %s276 = sand.u32 %s50, 1
          %s277 = scalar_lea.sflag [#allocation5], %s276
          %s278 = sand.u32 %s50, 1
          %s279 = smul.addr %s278, 4
          %s280 = scalar_lea.vmem [#allocation4], %s279
          %s282 = ssub.s32 64, 64
          %283 = vsyncadd %s277, %s282
          %s284 = smul.addr %s35, 64
          %s285 = scalar_lea.hbm %s0, %s284
          %s287 = sshll.u32 %s280, 4
          %s288 = int_to_ptr.vmem [resolvable:$true] %s287
          %290 = dma.hbm_to_vmem [thread:$0]  %s285, 64, %s288, %s277
        $region24: #{gpt_forward.2} parent=19 // pred_fallthru
          _
        // Predicated region
        $region25: #{gpt_forward.2} parent=19 // pred_check
          %p291 = pneg %p86
        $region26: #{gpt_forward.2} parent=19 // pred_check_branch
          %293 = sbr.rel (%p291) target = $region28
        $region27: #{gpt_forward.2} parent=19 // pred_region
          %s294 = sand.u32 %s28, 1
          %s295 = scalar_lea.sflag [#allocation8], %s294
          %s296 = sand.u32 %s76, 1
          %s297 = smul.addr %s296, 16
          %s298 = scalar_lea.vmem [#allocation7], %s297
          %s300 = ssub.s32 256, 256
          %301 = vsyncadd %s295, %s300
          %s302 = smul.addr %s36, 4
          %s303 = smul.addr %s302, 64
          %s304 = scalar_lea.hbm %s1, %s303
          %s305 = sshll.u32 %s298, 4
          %s306 = int_to_ptr.vmem [resolvable:$true] %s305
          %311 = dma.hbm_to_vmem [thread:$0]  %s304, 256, %s306, %s295, 64, 64, 4
        $region28: #{gpt_forward.2} parent=19 // pred_fallthru
          _
        // Predicated region
        $region29: #{gpt_forward.2} parent=19 // pred_check
          %p312 = pneg %p112
        $region30: #{gpt_forward.2} parent=19 // pred_check_branch
          %314 = sbr.rel (%p312) target = $region32
        $region31: #{gpt_forward.2} parent=19 // pred_region
          %s315 = sand.u32 %s28, 1
          %s316 = scalar_lea.sflag [#allocation8], %s315
          %s317 = sand.u32 %s102, 1
          %s318 = smul.addr %s317, 16
          %s319 = scalar_lea.vmem [#allocation9], %s318
          %s321 = ssub.s32 256, 256
          %322 = vsyncadd %s316, %s321
          %s323 = smul.addr %s36, 4
          %s324 = smul.addr %s323, 64
          %s325 = scalar_lea.hbm %s2, %s324
          %s326 = sshll.u32 %s319, 4
          %s327 = int_to_ptr.vmem [resolvable:$true] %s326
          %332 = dma.hbm_to_vmem [thread:$0]  %s325, 256, %s327, %s316, 64, 64, 4
        $region32: #{gpt_forward.2} parent=19 // pred_fallthru
          _
        // Predicated region
        $region33: #{gpt_forward.2} parent=19 // pred_check
          %p333 = pneg %p138
        $region34: #{gpt_forward.2} parent=19 // pred_check_branch
          %335 = sbr.rel (%p333) target = $region36
        $region35: #{gpt_forward.2} parent=19 // pred_region
          %s336 = sand.u32 %s28, 1
          %s337 = scalar_lea.sflag [#allocation11], %s336
          %s338 = sand.u32 %s128, 1
          %s339 = smul.addr %s338, 16
          %s340 = scalar_lea.vmem [#allocation10], %s339
          %s342 = ssub.s32 256, 256
          %343 = vsyncadd %s337, %s342
          %s344 = smul.addr %s36, 4
          %s345 = smul.addr %s344, 64
          %s346 = scalar_lea.hbm %s3, %s345
          %s347 = sshll.u32 %s340, 4
          %s348 = int_to_ptr.vmem [resolvable:$true] %s347
          %353 = dma.hbm_to_vmem [thread:$0]  %s346, 256, %s348, %s337, 64, 64, 4
        $region36: #{gpt_forward.2} parent=19 // pred_fallthru
          _
        // Predicated region
        $region37: #{gpt_forward.2} parent=19 // pred_check
          %p354 = pneg %p164
        $region38: #{gpt_forward.2} parent=19 // pred_check_branch
          %356 = sbr.rel (%p354) target = $region40
        $region39: #{gpt_forward.2} parent=19 // pred_region
          %s357 = sand.u32 %s28, 1
          %s358 = scalar_lea.sflag [#allocation11], %s357
          %s359 = sand.u32 %s154, 1
          %s360 = smul.addr %s359, 64
          %s361 = scalar_lea.vmem [#allocation12], %s360
          %s363 = ssub.s32 1024, 1024
          %364 = vsyncadd %s358, %s363
          %s365 = smul.addr %s36, 16
          %s366 = smul.addr %s365, 64
          %s367 = scalar_lea.hbm %s4, %s366
          %s368 = sshll.u32 %s361, 4
          %s369 = int_to_ptr.vmem [resolvable:$true] %s368
          %374 = dma.hbm_to_vmem [thread:$0]  %s367, 1024, %s369, %s358, 64, 64, 4
        $region40: #{gpt_forward.2} parent=19 // pred_fallthru
          _
        // Predicated region
        $region41: #{gpt_forward.2} parent=19 // pred_check
          %p375 = pneg %p190
        $region42: #{gpt_forward.2} parent=19 // pred_check_branch
          %377 = sbr.rel (%p375) target = $region44
        $region43: #{gpt_forward.2} parent=19 // pred_region
          %s378 = sand.u32 %s28, 1
          %s379 = scalar_lea.sflag [#allocation14], %s378
          %s380 = sand.u32 %s180, 1
          %s381 = smul.addr %s380, 8
          %s382 = scalar_lea.vmem [#allocation13], %s381
          %s384 = ssub.s32 128, 128
          %385 = vsyncadd %s379, %s384
          %s386 = smul.addr %s36, 128
          %s387 = scalar_lea.hbm %s5, %s386
          %s389 = sshll.u32 %s382, 4
          %s390 = int_to_ptr.vmem [resolvable:$true] %s389
          %392 = dma.hbm_to_vmem [thread:$0]  %s387, 128, %s390, %s379
        $region44: #{gpt_forward.2} parent=19 // pred_fallthru
          _
      $region20: #{gpt_forward.2} parent=5 // pred_fallthru
        _
      %p393 = scmp.le.s32.totalorder 1, %s28
      %p394 = scmp.lt.s32.totalorder %s28, 5
      %p395 = pnand %p393, %p394
      %p396 = pneg %p395
      // Predicated region
      $region45: #{gpt_forward.2} parent=5 // pred_check
        _
      $region46: #{gpt_forward.2} parent=5 // pred_check_branch
        %398 = sbr.rel (%p395) target = $region48
      $region47: #{gpt_forward.2} parent=5 // pred_region
        %s399 = ssub.s32 %s28, 1
        %s400 = sand.u32 %s53, 1
        %s401 = scalar_lea.sflag [#allocation5], %s400
        %s402 = sand.u32 %s53, 1
        %s403 = smul.addr %s402, 4
        %s404 = scalar_lea.vmem [#allocation4], %s403
        // Predicated region
        $region49: #{gpt_forward.2} parent=47 // pred_check
          %p405 = pneg %p66
        $region50: #{gpt_forward.2} parent=47 // pred_check_branch
          %407 = sbr.rel (%p405) target = $region52
        $region51: #{gpt_forward.2} parent=47 // pred_region
          %408 = dma.done %s401, 64
        $region52: #{gpt_forward.2} parent=47 // pred_fallthru
          _
        %s409 = sand.u32 %s33, 1
        %s410 = scalar_lea.sflag [#allocation8], %s409
        %s411 = sand.u32 %s79, 1
        %s412 = smul.addr %s411, 16
        %s413 = scalar_lea.vmem [#allocation7], %s412
        // Predicated region
        $region53: #{gpt_forward.2} parent=47 // pred_check
          %p414 = pneg %p92
        $region54: #{gpt_forward.2} parent=47 // pred_check_branch
          %416 = sbr.rel (%p414) target = $region56
        $region55: #{gpt_forward.2} parent=47 // pred_region
          %417 = dma.done %s410, 256
        $region56: #{gpt_forward.2} parent=47 // pred_fallthru
          _
        %s418 = sand.u32 %s33, 1
        %s419 = scalar_lea.sflag [#allocation8], %s418
        %s420 = sand.u32 %s105, 1
        %s421 = smul.addr %s420, 16
        %s422 = scalar_lea.vmem [#allocation9], %s421
        // Predicated region
        $region57: #{gpt_forward.2} parent=47 // pred_check
          %p423 = pneg %p118
        $region58: #{gpt_forward.2} parent=47 // pred_check_branch
          %425 = sbr.rel (%p423) target = $region60
        $region59: #{gpt_forward.2} parent=47 // pred_region
          %426 = dma.done %s419, 256
        $region60: #{gpt_forward.2} parent=47 // pred_fallthru
          _
        %s427 = sand.u32 %s33, 1
        %s428 = scalar_lea.sflag [#allocation11], %s427
        %s429 = sand.u32 %s131, 1
        %s430 = smul.addr %s429, 16
        %s431 = scalar_lea.vmem [#allocation10], %s430
        // Predicated region
        $region61: #{gpt_forward.2} parent=47 // pred_check
          %p432 = pneg %p144
        $region62: #{gpt_forward.2} parent=47 // pred_check_branch
          %434 = sbr.rel (%p432) target = $region64
        $region63: #{gpt_forward.2} parent=47 // pred_region
          %435 = dma.done %s428, 256
        $region64: #{gpt_forward.2} parent=47 // pred_fallthru
          _
        %s436 = sand.u32 %s33, 1
        %s437 = scalar_lea.sflag [#allocation11], %s436
        %s438 = sand.u32 %s157, 1
        %s439 = smul.addr %s438, 64
        %s440 = scalar_lea.vmem [#allocation12], %s439
        // Predicated region
        $region65: #{gpt_forward.2} parent=47 // pred_check
          %p441 = pneg %p170
        $region66: #{gpt_forward.2} parent=47 // pred_check_branch
          %443 = sbr.rel (%p441) target = $region68
        $region67: #{gpt_forward.2} parent=47 // pred_region
          %444 = dma.done %s437, 1024
        $region68: #{gpt_forward.2} parent=47 // pred_fallthru
          _
        %s445 = sand.u32 %s33, 1
        %s446 = scalar_lea.sflag [#allocation14], %s445
        %s447 = sand.u32 %s183, 1
        %s448 = smul.addr %s447, 8
        %s449 = scalar_lea.vmem [#allocation13], %s448
        // Predicated region
        $region69: #{gpt_forward.2} parent=47 // pred_check
          %p450 = pneg %p196
        $region70: #{gpt_forward.2} parent=47 // pred_check_branch
          %452 = sbr.rel (%p450) target = $region72
        $region71: #{gpt_forward.2} parent=47 // pred_region
          %453 = dma.done %s446, 128
        $region72: #{gpt_forward.2} parent=47 // pred_fallthru
          _
        // Predicated region
        $region73: #{gpt_forward.2} parent=47 // pred_check
          %p454 = pneg %p217
        $region74: #{gpt_forward.2} parent=47 // pred_check_branch
          %456 = sbr.rel (%p454) target = $region76
        $region75: #{gpt_forward.2} parent=47 // pred_region
          %457 = dma.done [#allocation14], 32
        $region76: #{gpt_forward.2} parent=47 // pred_fallthru
          _
        %s458 = sand.u32 %s53, 1
        %s459 = scalar_lea.sflag [#allocation5], %s458
        %s460 = sand.u32 %s53, 1
        %s461 = smul.addr %s460, 4
        %s462 = scalar_lea.vmem [#allocation4], %s461
        %p463 = pneg %p66
        %p464 = pneg %p63
        %s465 = sand.u32 %s33, 1
        %s466 = scalar_lea.sflag [#allocation8], %s465
        %s467 = sand.u32 %s79, 1
        %s468 = smul.addr %s467, 16
        %s469 = scalar_lea.vmem [#allocation7], %s468
        %p470 = pneg %p92
        %p471 = pneg %p89
        %s472 = sand.u32 %s33, 1
        %s473 = scalar_lea.sflag [#allocation8], %s472
        %s474 = sand.u32 %s105, 1
        %s475 = smul.addr %s474, 16
        %s476 = scalar_lea.vmem [#allocation9], %s475
        %p477 = pneg %p118
        %p478 = pneg %p115
        %s479 = sand.u32 %s33, 1
        %s480 = scalar_lea.sflag [#allocation11], %s479
        %s481 = sand.u32 %s131, 1
        %s482 = smul.addr %s481, 16
        %s483 = scalar_lea.vmem [#allocation10], %s482
        %p484 = pneg %p144
        %p485 = pneg %p141
        %s486 = sand.u32 %s33, 1
        %s487 = scalar_lea.sflag [#allocation11], %s486
        %s488 = sand.u32 %s157, 1
        %s489 = smul.addr %s488, 64
        %s490 = scalar_lea.vmem [#allocation12], %s489
        %p491 = pneg %p170
        %p492 = pneg %p167
        %s493 = sand.u32 %s33, 1
        %s494 = scalar_lea.sflag [#allocation14], %s493
        %s495 = sand.u32 %s183, 1
        %s496 = smul.addr %s495, 8
        %s497 = scalar_lea.vmem [#allocation13], %s496
        %p498 = pneg %p196
        %p499 = pneg %p193
        %p500 = pneg %p217
        %p501 = pneg %p214
        %p502 = pneg %p243
        %p503 = pneg %p240
        %s504 = sand.u32 %s230, 1
        %s505 = scalar_lea.sflag [#allocation6], %s504
        %s506 = sand.u32 %s230, 1
        %s507 = smul.addr %s506, 4
        %s508 = scalar_lea.vmem [#allocation16], %s507
        %p514 = scmp.eq.s32.totalorder %s38, 0
        // Predicated region
        $region77: #{gpt_forward.2} parent=47 // pred_check
          %p515 = pneg %p514
        $region78: #{gpt_forward.2} parent=47 // pred_check_branch
          %517 = sbr.rel (%p515) target = $region80
        $region79: #{gpt_forward.2} parent=47 // pred_region
          %v518 = vld [vmem:[%s404] sm:$0xf]
          %v519 = vunpack.c.l.bf16 %v518
          %vm520 = vcmask 261120
          %521 = vst.msk [vmem:[#allocation2] sm:$0xff] %vm520, %v519
        $region80: #{gpt_forward.2} parent=47 // pred_fallthru
          _
        %v522 = vld [vmem:[#allocation2] sm:$0xff]
        %v523 = vld [vmem:[%s449] sm:$0xff]
        %vm524 = vcmask 261120
        %v525 = vsel %vm524, %v522, 0.0
        %526 = vadd.xlane.f32.xlu0 %v525
        %v527 = vpop.xlane.xlu0 %526
        %v528 = vrcp.pop 32.0
        %v529 = vmul.f32 %v527, %v528
        %v530 = vsub.f32 %v522, %v529
        %v531 = vmul.f32 %v530, %v530
        %v532 = vsel %vm524, %v531, 0.0
        %533 = vadd.xlane.f32.xlu0 %v532
        %v534 = vpop.xlane.xlu0 %533
        %v535 = vmul.f32 %v534, %v528
        %v536 = vadd.f32 %v535, 1e-05
        %v537 = vrsqrt.pop %v536
        %v538 = vmul.f32 %v530, %v537
        %v539 = vlaneseq
        %v540 = vshrl.u32 %v539, 7
        %v541 = vsub.s32 0, %v540
        %v542 = vrot.slane %v523, %v541
        %v543 = vmul.f32 %v538, %v542
        %v544 = vlaneseq
        %v545 = vshrl.u32 %v544, 7
        %v546 = vsub.s32 1, %v545
        %v547 = vrot.slane %v523, %v546
        %v548 = vadd.f32 %v543, %v547
        %v549 = vpack.c.bf16 %v548, %v548
        %v550 = vld [vmem:[%s413] sm:$0xf]
        %v551 = vld [vmem:[%s413 + $0x4] sm:$0xf]
        %v552 = vld [vmem:[%s413 + $0x8] sm:$0xf]
        %v553 = vld [vmem:[%s413 + $0xc] sm:$0xf]
        %v558 = vunpack.c.l.b16 %v550
        %v559 = vunpack.c.l.b16 %v551
        %v560 = vunpack.c.l.b16 %v552
        %v561 = vunpack.c.l.b16 %v553
        %v562 = vpack.c.b16 %v559, %v558
        %v563 = vpack.c.b16 %v561, %v560
        %v567 = vsel %vm524, %v549, 0
        %569 = vmatprep.subr.bf16.mxu0 0
        %570 = vmatpush1.bf16.msra.mxu0 %v562
        %571 = vmatprep.subr.bf16.mxu0 0
        %572 = vmatpush1.bf16.msra.mxu0 %v563
        %573 = vmatprep.subr.bf16.mxu0 0
        %574 = vmatpush1.bf16.msra.mxu0 0
        %575 = vmatprep.subr.bf16.mxu0 0
        %576 = vmatpush1.bf16.msra.mxu0 0
        %577 = vmatprep.subr.bf16.mxu0 0
        %578 = vmatpush1.bf16.msra.mxu0 0
        %579 = vmatprep.subr.bf16.mxu0 0
        %580 = vmatpush1.bf16.msra.mxu0 0
        %581 = vmatprep.subr.bf16.mxu0 0
        %582 = vmatpush1.bf16.msra.mxu0 0
        %583 = vmatprep.subr.bf16.mxu0 0
        %584 = vmatpush1.bf16.msra.mxu0 0
        %585 = vmatprep.subr.bf16.mxu0 0
        %586 = vmatpush1.bf16.msra.mxu0 0
        %587 = vmatprep.subr.bf16.mxu0 0
        %588 = vmatpush1.bf16.msra.mxu0 0
        %589 = vmatprep.subr.bf16.mxu0 0
        %590 = vmatpush1.bf16.msra.mxu0 0
        %591 = vmatprep.subr.bf16.mxu0 0
        %592 = vmatpush1.bf16.msra.mxu0 0
        %593 = vmatprep.subr.bf16.mxu0 0
        %594 = vmatpush1.bf16.msra.mxu0 0
        %595 = vmatprep.subr.bf16.mxu0 0
        %596 = vmatpush1.bf16.msra.mxu0 0
        %597 = vmatprep.subr.bf16.mxu0 0
        %598 = vmatpush1.bf16.msra.mxu0 0
        %599 = vmatprep.subr.bf16.mxu0 0
        %600 = vmatpush1.bf16.msra.mxu0 0
        %601 = vmatprep.mubr.bf16.mxu0 0
        %602 = vmatmul.mubr.bf16.gmra.mrb[0].mxu0 %v567
        %v603 = vpop.f32.mrb[0].mxu0
        %v604 = vadd.f32 0.0, %v603
        %v605 = vpop.f32.mrb[0].mxu0
        %v606 = vpop.f32.mrb[0].mxu0
        %v607 = vpop.f32.mrb[0].mxu0
        %608 = vdwg.mxu0
        %v609 = vlaneseq
        %v610 = vshrl.u32 %v609, 7
        %v611 = vlaneseq
        %v612 = vand.u32 %v611, 127
        %vm613 = vcmp.gt.s32.totalorder %v612, %v610
        %v614 = vpack.c.bf16 %v604, %v604
        %616 = vrot.lane.b32.xlu0 %v614, 96
        %v617 = vpop.permute.xlu0 %616
        %vm618 = vcmask 64512
        %v620 = vsel %vm618, %v614, 0
        %v623 = vsel %vm618, %v617, 0
        %625 = vmatprep.subr.bf16.mxu0 0
        %626 = vmatpush1.bf16.xpose.msra.mxu0 %v623
        %627 = vmatprep.subr.bf16.mxu0 0
        %628 = vmatpush1.bf16.xpose.msra.mxu0 0
        %629 = vmatprep.subr.bf16.mxu0 0
        %630 = vmatpush1.bf16.xpose.msra.mxu0 0
        %631 = vmatprep.subr.bf16.mxu0 0
        %632 = vmatpush1.bf16.xpose.msra.mxu0 0
        %633 = vmatprep.subr.bf16.mxu0 0
        %634 = vmatpush1.bf16.xpose.msra.mxu0 0
        %635 = vmatprep.subr.bf16.mxu0 0
        %636 = vmatpush1.bf16.xpose.msra.mxu0 0
        %637 = vmatprep.subr.bf16.mxu0 0
        %638 = vmatpush1.bf16.xpose.msra.mxu0 0
        %639 = vmatprep.subr.bf16.mxu0 0
        %640 = vmatpush1.bf16.xpose.msra.mxu0 0
        %641 = vmatprep.subr.bf16.mxu0 0
        %642 = vmatpush1.bf16.xpose.msra.mxu0 0
        %643 = vmatprep.subr.bf16.mxu0 0
        %644 = vmatpush1.bf16.xpose.msra.mxu0 0
        %645 = vmatprep.subr.bf16.mxu0 0
        %646 = vmatpush1.bf16.xpose.msra.mxu0 0
        %647 = vmatprep.subr.bf16.mxu0 0
        %648 = vmatpush1.bf16.xpose.msra.mxu0 0
        %649 = vmatprep.subr.bf16.mxu0 0
        %650 = vmatpush1.bf16.xpose.msra.mxu0 0
        %651 = vmatprep.subr.bf16.mxu0 0
        %652 = vmatpush1.bf16.xpose.msra.mxu0 0
        %653 = vmatprep.subr.bf16.mxu0 0
        %654 = vmatpush1.bf16.xpose.msra.mxu0 0
        %655 = vmatprep.subr.bf16.mxu0 0
        %656 = vmatpush1.bf16.xpose.msra.mxu0 0
        %657 = vmatprep.mubr.bf16.mxu0 0
        %658 = vmatmul.mubr.bf16.gmra.mrb[0].mxu0 %v620
        %v659 = vpop.f32.mrb[0].mxu0
        %v660 = vadd.f32 0.0, %v659
        %v661 = vpop.f32.mrb[0].mxu0
        %v662 = vpop.f32.mrb[0].mxu0
        %v663 = vpop.f32.mrb[0].mxu0
        %664 = vdwg.mxu0
        %v665 = vsel %vm613, -1e+30, %v660
        %v666 = vsel %vm618, %v665, -inf
        %667 = vmax.xlane.f32.xlu0 %v666
        %v668 = vpop.xlane.xlu0 %667
        %v669 = vsub.f32 %v665, %v668
        %v670 = vmul.f32 %v669, 1.442695
        %v671 = vpow.pop %v670
        %v672 = vsel %vm618, %v671, 0.0
        %673 = vadd.xlane.f32.xlu0 %v672
        %v674 = vpop.xlane.xlu0 %673
        %v675 = vrcp.pop %v674
        %v676 = vmul.f32 %v671, %v675
        %v677 = vpack.c.bf16 %v676, %v676
        %678 = vrot.lane.b32.xlu0 %v614, 64
        %v679 = vpop.permute.xlu0 %678
        %v681 = vsel %vm618, %v677, 0
        %vm683 = vcmask 1043456
        %v685 = vsel %vm683, %v679, 0
        %687 = vmatprep.subr.bf16.mxu0 0
        %688 = vmatpush1.bf16.msra.mxu0 %v685
        %689 = vmatprep.subr.bf16.mxu0 0
        %690 = vmatpush1.bf16.msra.mxu0 0
        %691 = vmatprep.subr.bf16.mxu0 0
        %692 = vmatpush1.bf16.msra.mxu0 0
        %693 = vmatprep.subr.bf16.mxu0 0
        %694 = vmatpush1.bf16.msra.mxu0 0
        %695 = vmatprep.subr.bf16.mxu0 0
        %696 = vmatpush1.bf16.msra.mxu0 0
        %697 = vmatprep.subr.bf16.mxu0 0
        %698 = vmatpush1.bf16.msra.mxu0 0
        %699 = vmatprep.subr.bf16.mxu0 0
        %700 = vmatpush1.bf16.msra.mxu0 0
        %701 = vmatprep.subr.bf16.mxu0 0
        %702 = vmatpush1.bf16.msra.mxu0 0
        %703 = vmatprep.subr.bf16.mxu0 0
        %704 = vmatpush1.bf16.msra.mxu0 0
        %705 = vmatprep.subr.bf16.mxu0 0
        %706 = vmatpush1.bf16.msra.mxu0 0
        %707 = vmatprep.subr.bf16.mxu0 0
        %708 = vmatpush1.bf16.msra.mxu0 0
        %709 = vmatprep.subr.bf16.mxu0 0
        %710 = vmatpush1.bf16.msra.mxu0 0
        %711 = vmatprep.subr.bf16.mxu0 0
        %712 = vmatpush1.bf16.msra.mxu0 0
        %713 = vmatprep.subr.bf16.mxu0 0
        %714 = vmatpush1.bf16.msra.mxu0 0
        %715 = vmatprep.subr.bf16.mxu0 0
        %716 = vmatpush1.bf16.msra.mxu0 0
        %717 = vmatprep.subr.bf16.mxu0 0
        %718 = vmatpush1.bf16.msra.mxu0 0
        %719 = vmatprep.mubr.bf16.mxu0 0
        %720 = vmatmul.mubr.bf16.gmra.mrb[0].mxu0 %v681
        %v721 = vpop.f32.mrb[0].mxu0
        %v722 = vadd.f32 0.0, %v721
        %v723 = vpop.f32.mrb[0].mxu0
        %v724 = vpop.f32.mrb[0].mxu0
        %v725 = vpop.f32.mrb[0].mxu0
        %726 = vdwg.mxu0
        %v727 = vpack.c.bf16 %v722, %v722
        %vm728 = vcmask 60416
        %729 = vst.msk [vmem:[#allocation3] sm:$0xf] %vm728, %v727
        %730 = vrot.lane.b32.xlu0 %v614, 120
        %v731 = vpop.permute.xlu0 %730
        %732 = vrot.lane.b32.xlu0 %v614, 88
        %v733 = vpop.permute.xlu0 %732
        %v735 = vsel %vm618, %v731, 0
        %v738 = vsel %vm618, %v733, 0
        %740 = vmatprep.subr.bf16.mxu0 0
        %741 = vmatpush1.bf16.xpose.msra.mxu0 %v738
        %742 = vmatprep.subr.bf16.mxu0 0
        %743 = vmatpush1.bf16.xpose.msra.mxu0 0
        %744 = vmatprep.subr.bf16.mxu0 0
        %745 = vmatpush1.bf16.xpose.msra.mxu0 0
        %746 = vmatprep.subr.bf16.mxu0 0
        %747 = vmatpush1.bf16.xpose.msra.mxu0 0
        %748 = vmatprep.subr.bf16.mxu0 0
        %749 = vmatpush1.bf16.xpose.msra.mxu0 0
        %750 = vmatprep.subr.bf16.mxu0 0
        %751 = vmatpush1.bf16.xpose.msra.mxu0 0
        %752 = vmatprep.subr.bf16.mxu0 0
        %753 = vmatpush1.bf16.xpose.msra.mxu0 0
        %754 = vmatprep.subr.bf16.mxu0 0
        %755 = vmatpush1.bf16.xpose.msra.mxu0 0
        %756 = vmatprep.subr.bf16.mxu0 0
        %757 = vmatpush1.bf16.xpose.msra.mxu0 0
        %758 = vmatprep.subr.bf16.mxu0 0
        %759 = vmatpush1.bf16.xpose.msra.mxu0 0
        %760 = vmatprep.subr.bf16.mxu0 0
        %761 = vmatpush1.bf16.xpose.msra.mxu0 0
        %762 = vmatprep.subr.bf16.mxu0 0
        %763 = vmatpush1.bf16.xpose.msra.mxu0 0
        %764 = vmatprep.subr.bf16.mxu0 0
        %765 = vmatpush1.bf16.xpose.msra.mxu0 0
        %766 = vmatprep.subr.bf16.mxu0 0
        %767 = vmatpush1.bf16.xpose.msra.mxu0 0
        %768 = vmatprep.subr.bf16.mxu0 0
        %769 = vmatpush1.bf16.xpose.msra.mxu0 0
        %770 = vmatprep.subr.bf16.mxu0 0
        %771 = vmatpush1.bf16.xpose.msra.mxu0 0
        %772 = vmatprep.mubr.bf16.mxu0 0
        %773 = vmatmul.mubr.bf16.gmra.mrb[0].mxu0 %v735
        %v774 = vpop.f32.mrb[0].mxu0
        %v775 = vadd.f32 0.0, %v774
        %v776 = vpop.f32.mrb[0].mxu0
        %v777 = vpop.f32.mrb[0].mxu0
        %v778 = vpop.f32.mrb[0].mxu0
        %779 = vdwg.mxu0
        %v780 = vsel %vm613, -1e+30, %v775
        %v781 = vsel %vm618, %v780, -inf
        %782 = vmax.xlane.f32.xlu0 %v781
        %v783 = vpop.xlane.xlu0 %782
        %v784 = vsub.f32 %v780, %v783
        %v785 = vmul.f32 %v784, 1.442695
        %v786 = vpow.pop %v785
        %v787 = vsel %vm618, %v786, 0.0
        %788 = vadd.xlane.f32.xlu0 %v787
        %v789 = vpop.xlane.xlu0 %788
        %v790 = vrcp.pop %v789
        %v791 = vmul.f32 %v786, %v790
        %v792 = vpack.c.bf16 %v791, %v791
        %793 = vrot.lane.b32.xlu0 %v614, 56
        %v794 = vpop.permute.xlu0 %793
        %v796 = vsel %vm618, %v792, 0
        %v799 = vsel %vm683, %v794, 0
        %801 = vmatprep.subr.bf16.mxu0 0
        %802 = vmatpush1.bf16.msra.mxu0 %v799
        %803 = vmatprep.subr.bf16.mxu0 0
        %804 = vmatpush1.bf16.msra.mxu0 0
        %805 = vmatprep.subr.bf16.mxu0 0
        %806 = vmatpush1.bf16.msra.mxu0 0
        %807 = vmatprep.subr.bf16.mxu0 0
        %808 = vmatpush1.bf16.msra.mxu0 0
        %809 = vmatprep.subr.bf16.mxu0 0
        %810 = vmatpush1.bf16.msra.mxu0 0
        %811 = vmatprep.subr.bf16.mxu0 0
        %812 = vmatpush1.bf16.msra.mxu0 0
        %813 = vmatprep.subr.bf16.mxu0 0
        %814 = vmatpush1.bf16.msra.mxu0 0
        %815 = vmatprep.subr.bf16.mxu0 0
        %816 = vmatpush1.bf16.msra.mxu0 0
        %817 = vmatprep.subr.bf16.mxu0 0
        %818 = vmatpush1.bf16.msra.mxu0 0
        %819 = vmatprep.subr.bf16.mxu0 0
        %820 = vmatpush1.bf16.msra.mxu0 0
        %821 = vmatprep.subr.bf16.mxu0 0
        %822 = vmatpush1.bf16.msra.mxu0 0
        %823 = vmatprep.subr.bf16.mxu0 0
        %824 = vmatpush1.bf16.msra.mxu0 0
        %825 = vmatprep.subr.bf16.mxu0 0
        %826 = vmatpush1.bf16.msra.mxu0 0
        %827 = vmatprep.subr.bf16.mxu0 0
        %828 = vmatpush1.bf16.msra.mxu0 0
        %829 = vmatprep.subr.bf16.mxu0 0
        %830 = vmatpush1.bf16.msra.mxu0 0
        %831 = vmatprep.subr.bf16.mxu0 0
        %832 = vmatpush1.bf16.msra.mxu0 0
        %833 = vmatprep.mubr.bf16.mxu0 0
        %834 = vmatmul.mubr.bf16.gmra.mrb[0].mxu0 %v796
        %v835 = vpop.f32.mrb[0].mxu0
        %v836 = vadd.f32 0.0, %v835
        %v837 = vpop.f32.mrb[0].mxu0
        %v838 = vpop.f32.mrb[0].mxu0
        %v839 = vpop.f32.mrb[0].mxu0
        %840 = vdwg.mxu0
        %v841 = vpack.c.bf16 %v836, %v836
        %v843 = vunpack.c.l.b16 %v841
        %v844 = vpack.c.b16 %v843, %v843
        %845 = vrot.lane.b32.xlu0 %v844, 8
        %v846 = vpop.permute.xlu0 %845
        %vm848 = vcmask 126016
        %849 = vst.msk [vmem:[#allocation3] sm:$0xf] %vm848, %v846
        %850 = vrot.lane.b32.xlu0 %v614, 112
        %v851 = vpop.permute.xlu0 %850
        %852 = vrot.lane.b32.xlu0 %v614, 80
        %v853 = vpop.permute.xlu0 %852
        %v855 = vsel %vm618, %v851, 0
        %v858 = vsel %vm618, %v853, 0
        %860 = vmatprep.subr.bf16.mxu0 0
        %861 = vmatpush1.bf16.xpose.msra.mxu0 %v858
        %862 = vmatprep.subr.bf16.mxu0 0
        %863 = vmatpush1.bf16.xpose.msra.mxu0 0
        %864 = vmatprep.subr.bf16.mxu0 0
        %865 = vmatpush1.bf16.xpose.msra.mxu0 0
        %866 = vmatprep.subr.bf16.mxu0 0
        %867 = vmatpush1.bf16.xpose.msra.mxu0 0
        %868 = vmatprep.subr.bf16.mxu0 0
        %869 = vmatpush1.bf16.xpose.msra.mxu0 0
        %870 = vmatprep.subr.bf16.mxu0 0
        %871 = vmatpush1.bf16.xpose.msra.mxu0 0
        %872 = vmatprep.subr.bf16.mxu0 0
        %873 = vmatpush1.bf16.xpose.msra.mxu0 0
        %874 = vmatprep.subr.bf16.mxu0 0
        %875 = vmatpush1.bf16.xpose.msra.mxu0 0
        %876 = vmatprep.subr.bf16.mxu0 0
        %877 = vmatpush1.bf16.xpose.msra.mxu0 0
        %878 = vmatprep.subr.bf16.mxu0 0
        %879 = vmatpush1.bf16.xpose.msra.mxu0 0
        %880 = vmatprep.subr.bf16.mxu0 0
        %881 = vmatpush1.bf16.xpose.msra.mxu0 0
        %882 = vmatprep.subr.bf16.mxu0 0
        %883 = vmatpush1.bf16.xpose.msra.mxu0 0
        %884 = vmatprep.subr.bf16.mxu0 0
        %885 = vmatpush1.bf16.xpose.msra.mxu0 0
        %886 = vmatprep.subr.bf16.mxu0 0
        %887 = vmatpush1.bf16.xpose.msra.mxu0 0
        %888 = vmatprep.subr.bf16.mxu0 0
        %889 = vmatpush1.bf16.xpose.msra.mxu0 0
        %890 = vmatprep.subr.bf16.mxu0 0
        %891 = vmatpush1.bf16.xpose.msra.mxu0 0
        %892 = vmatprep.mubr.bf16.mxu0 0
        %893 = vmatmul.mubr.bf16.gmra.mrb[0].mxu0 %v855
        %v894 = vpop.f32.mrb[0].mxu0
        %v895 = vadd.f32 0.0, %v894
        %v896 = vpop.f32.mrb[0].mxu0
        %v897 = vpop.f32.mrb[0].mxu0
        %v898 = vpop.f32.mrb[0].mxu0
        %899 = vdwg.mxu0
        %v900 = vsel %vm613, -1e+30, %v895
        %v901 = vsel %vm618, %v900, -inf
        %902 = vmax.xlane.f32.xlu0 %v901
        %v903 = vpop.xlane.xlu0 %902
        %v904 = vsub.f32 %v900, %v903
        %v905 = vmul.f32 %v904, 1.442695
        %v906 = vpow.pop %v905
        %v907 = vsel %vm618, %v906, 0.0
        %908 = vadd.xlane.f32.xlu0 %v907
        %v909 = vpop.xlane.xlu0 %908
        %v910 = vrcp.pop %v909
        %v911 = vmul.f32 %v906, %v910
        %v912 = vpack.c.bf16 %v911, %v911
        %913 = vrot.lane.b32.xlu0 %v614, 48
        %v914 = vpop.permute.xlu0 %913
        %v916 = vsel %vm618, %v912, 0
        %v919 = vsel %vm683, %v914, 0
        %921 = vmatprep.subr.bf16.mxu0 0
        %922 = vmatpush1.bf16.msra.mxu0 %v919
        %923 = vmatprep.subr.bf16.mxu0 0
        %924 = vmatpush1.bf16.msra.mxu0 0
        %925 = vmatprep.subr.bf16.mxu0 0
        %926 = vmatpush1.bf16.msra.mxu0 0
        %927 = vmatprep.subr.bf16.mxu0 0
        %928 = vmatpush1.bf16.msra.mxu0 0
        %929 = vmatprep.subr.bf16.mxu0 0
        %930 = vmatpush1.bf16.msra.mxu0 0
        %931 = vmatprep.subr.bf16.mxu0 0
        %932 = vmatpush1.bf16.msra.mxu0 0
        %933 = vmatprep.subr.bf16.mxu0 0
        %934 = vmatpush1.bf16.msra.mxu0 0
        %935 = vmatprep.subr.bf16.mxu0 0
        %936 = vmatpush1.bf16.msra.mxu0 0
        %937 = vmatprep.subr.bf16.mxu0 0
        %938 = vmatpush1.bf16.msra.mxu0 0
        %939 = vmatprep.subr.bf16.mxu0 0
        %940 = vmatpush1.bf16.msra.mxu0 0
        %941 = vmatprep.subr.bf16.mxu0 0
        %942 = vmatpush1.bf16.msra.mxu0 0
        %943 = vmatprep.subr.bf16.mxu0 0
        %944 = vmatpush1.bf16.msra.mxu0 0
        %945 = vmatprep.subr.bf16.mxu0 0
        %946 = vmatpush1.bf16.msra.mxu0 0
        %947 = vmatprep.subr.bf16.mxu0 0
        %948 = vmatpush1.bf16.msra.mxu0 0
        %949 = vmatprep.subr.bf16.mxu0 0
        %950 = vmatpush1.bf16.msra.mxu0 0
        %951 = vmatprep.subr.bf16.mxu0 0
        %952 = vmatpush1.bf16.msra.mxu0 0
        %953 = vmatprep.mubr.bf16.mxu0 0
        %954 = vmatmul.mubr.bf16.gmra.mrb[0].mxu0 %v916
        %v955 = vpop.f32.mrb[0].mxu0
        %v956 = vadd.f32 0.0, %v955
        %v957 = vpop.f32.mrb[0].mxu0
        %v958 = vpop.f32.mrb[0].mxu0
        %v959 = vpop.f32.mrb[0].mxu0
        %960 = vdwg.mxu0
        %v961 = vpack.c.bf16 %v956, %v956
        %v963 = vunpack.c.l.b16 %v961
        %v964 = vpack.c.b16 %v963, %v963
        %965 = vrot.lane.b32.xlu0 %v964, 16
        %v966 = vpop.permute.xlu0 %965
        %vm968 = vcmask 191616
        %969 = vst.msk [vmem:[#allocation3] sm:$0xf] %vm968, %v966
        %970 = vrot.lane.b32.xlu0 %v614, 104
        %v971 = vpop.permute.xlu0 %970
        %972 = vrot.lane.b32.xlu0 %v614, 72
        %v973 = vpop.permute.xlu0 %972
        %v975 = vsel %vm618, %v971, 0
        %v978 = vsel %vm618, %v973, 0
        %980 = vmatprep.subr.bf16.mxu0 0
        %981 = vmatpush1.bf16.xpose.msra.mxu0 %v978
        %982 = vmatprep.subr.bf16.mxu0 0
        %983 = vmatpush1.bf16.xpose.msra.mxu0 0
        %984 = vmatprep.subr.bf16.mxu0 0
        %985 = vmatpush1.bf16.xpose.msra.mxu0 0
        %986 = vmatprep.subr.bf16.mxu0 0
        %987 = vmatpush1.bf16.xpose.msra.mxu0 0
        %988 = vmatprep.subr.bf16.mxu0 0
        %989 = vmatpush1.bf16.xpose.msra.mxu0 0
        %990 = vmatprep.subr.bf16.mxu0 0
        %991 = vmatpush1.bf16.xpose.msra.mxu0 0
        %992 = vmatprep.subr.bf16.mxu0 0
        %993 = vmatpush1.bf16.xpose.msra.mxu0 0
        %994 = vmatprep.subr.bf16.mxu0 0
        %995 = vmatpush1.bf16.xpose.msra.mxu0 0
        %996 = vmatprep.subr.bf16.mxu0 0
        %997 = vmatpush1.bf16.xpose.msra.mxu0 0
        %998 = vmatprep.subr.bf16.mxu0 0
        %999 = vmatpush1.bf16.xpose.msra.mxu0 0
        %1000 = vmatprep.subr.bf16.mxu0 0
        %1001 = vmatpush1.bf16.xpose.msra.mxu0 0
        %1002 = vmatprep.subr.bf16.mxu0 0
        %1003 = vmatpush1.bf16.xpose.msra.mxu0 0
        %1004 = vmatprep.subr.bf16.mxu0 0
        %1005 = vmatpush1.bf16.xpose.msra.mxu0 0
        %1006 = vmatprep.subr.bf16.mxu0 0
        %1007 = vmatpush1.bf16.xpose.msra.mxu0 0
        %1008 = vmatprep.subr.bf16.mxu0 0
        %1009 = vmatpush1.bf16.xpose.msra.mxu0 0
        %1010 = vmatprep.subr.bf16.mxu0 0
        %1011 = vmatpush1.bf16.xpose.msra.mxu0 0
        %1012 = vmatprep.mubr.bf16.mxu0 0
        %1013 = vmatmul.mubr.bf16.gmra.mrb[0].mxu0 %v975
        %v1014 = vpop.f32.mrb[0].mxu0
        %v1015 = vadd.f32 0.0, %v1014
        %v1016 = vpop.f32.mrb[0].mxu0
        %v1017 = vpop.f32.mrb[0].mxu0
        %v1018 = vpop.f32.mrb[0].mxu0
        %1019 = vdwg.mxu0
        %v1020 = vsel %vm613, -1e+30, %v1015
        %v1021 = vsel %vm618, %v1020, -inf
        %1022 = vmax.xlane.f32.xlu0 %v1021
        %v1023 = vpop.xlane.xlu0 %1022
        %v1024 = vsub.f32 %v1020, %v1023
        %v1025 = vmul.f32 %v1024, 1.442695
        %v1026 = vpow.pop %v1025
        %v1027 = vsel %vm618, %v1026, 0.0
        %1028 = vadd.xlane.f32.xlu0 %v1027
        %v1029 = vpop.xlane.xlu0 %1028
        %v1030 = vrcp.pop %v1029
        %v1031 = vmul.f32 %v1026, %v1030
        %v1032 = vpack.c.bf16 %v1031, %v1031
        %1033 = vrot.lane.b32.xlu0 %v614, 40
        %v1034 = vpop.permute.xlu0 %1033
        %v1036 = vsel %vm618, %v1032, 0
        %v1039 = vsel %vm683, %v1034, 0
        %1041 = vmatprep.subr.bf16.mxu0 0
        %1042 = vmatpush1.bf16.msra.mxu0 %v1039
        %1043 = vmatprep.subr.bf16.mxu0 0
        %1044 = vmatpush1.bf16.msra.mxu0 0
        %1045 = vmatprep.subr.bf16.mxu0 0
        %1046 = vmatpush1.bf16.msra.mxu0 0
        %1047 = vmatprep.subr.bf16.mxu0 0
        %1048 = vmatpush1.bf16.msra.mxu0 0
        %1049 = vmatprep.subr.bf16.mxu0 0
        %1050 = vmatpush1.bf16.msra.mxu0 0
        %1051 = vmatprep.subr.bf16.mxu0 0
        %1052 = vmatpush1.bf16.msra.mxu0 0
        %1053 = vmatprep.subr.bf16.mxu0 0
        %1054 = vmatpush1.bf16.msra.mxu0 0
        %1055 = vmatprep.subr.bf16.mxu0 0
        %1056 = vmatpush1.bf16.msra.mxu0 0
        %1057 = vmatprep.subr.bf16.mxu0 0
        %1058 = vmatpush1.bf16.msra.mxu0 0
        %1059 = vmatprep.subr.bf16.mxu0 0
        %1060 = vmatpush1.bf16.msra.mxu0 0
        %1061 = vmatprep.subr.bf16.mxu0 0
        %1062 = vmatpush1.bf16.msra.mxu0 0
        %1063 = vmatprep.subr.bf16.mxu0 0
        %1064 = vmatpush1.bf16.msra.mxu0 0
        %1065 = vmatprep.subr.bf16.mxu0 0
        %1066 = vmatpush1.bf16.msra.mxu0 0
        %1067 = vmatprep.subr.bf16.mxu0 0
        %1068 = vmatpush1.bf16.msra.mxu0 0
        %1069 = vmatprep.subr.bf16.mxu0 0
        %1070 = vmatpush1.bf16.msra.mxu0 0
        %1071 = vmatprep.subr.bf16.mxu0 0
        %1072 = vmatpush1.bf16.msra.mxu0 0
        %1073 = vmatprep.mubr.bf16.mxu0 0
        %1074 = vmatmul.mubr.bf16.gmra.mrb[0].mxu0 %v1036
        %v1075 = vpop.f32.mrb[0].mxu0
        %v1076 = vadd.f32 0.0, %v1075
        %v1077 = vpop.f32.mrb[0].mxu0
        %v1078 = vpop.f32.mrb[0].mxu0
        %v1079 = vpop.f32.mrb[0].mxu0
        %1080 = vdwg.mxu0
        %v1081 = vpack.c.bf16 %v1076, %v1076
        %v1083 = vunpack.c.l.b16 %v1081
        %v1084 = vpack.c.b16 %v1083, %v1083
        %1085 = vrot.lane.b32.xlu0 %v1084, 24
        %v1086 = vpop.permute.xlu0 %1085
        %vm1088 = vcmask 257216
        %1089 = vst.msk [vmem:[#allocation3] sm:$0xf] %vm1088, %v1086
        %v1090 = vld [vmem:[#allocation3] sm:$0xf]
        %v1091 = vld [vmem:[%s422] sm:$0xf]
        %v1092 = vld [vmem:[%s422 + $0x4] sm:$0xf]
        %v1093 = vld [vmem:[%s422 + $0x8] sm:$0xf]
        %v1094 = vld [vmem:[%s422 + $0xc] sm:$0xf]
        %v1095 = vlaneseq
        %v1096 = vshrl.u32 %v1095, 7
        %v1097 = vsub.s32 2, %v1096
        %v1098 = vrot.slane %v523, %v1097
        %v1103 = vunpack.c.l.b16 %v1091
        %v1104 = vunpack.c.l.b16 %v1092
        %v1105 = vunpack.c.l.b16 %v1093
        %v1106 = vunpack.c.l.b16 %v1094
        %v1107 = vpack.c.b16 %v1104, %v1103
        %v1108 = vpack.c.b16 %v1106, %v1105
        %v1112 = vsel %vm524, %v1090, 0
        %1114 = vmatprep.subr.bf16.mxu0 0
        %1115 = vmatpush1.bf16.msra.mxu0 %v1107
        %1116 = vmatprep.subr.bf16.mxu0 0
        %1117 = vmatpush1.bf16.msra.mxu0 %v1108
        %1118 = vmatprep.subr.bf16.mxu0 0
        %1119 = vmatpush1.bf16.msra.mxu0 0
        %1120 = vmatprep.subr.bf16.mxu0 0
        %1121 = vmatpush1.bf16.msra.mxu0 0
        %1122 = vmatprep.subr.bf16.mxu0 0
        %1123 = vmatpush1.bf16.msra.mxu0 0
        %1124 = vmatprep.subr.bf16.mxu0 0
        %1125 = vmatpush1.bf16.msra.mxu0 0
        %1126 = vmatprep.subr.bf16.mxu0 0
        %1127 = vmatpush1.bf16.msra.mxu0 0
        %1128 = vmatprep.subr.bf16.mxu0 0
        %1129 = vmatpush1.bf16.msra.mxu0 0
        %1130 = vmatprep.subr.bf16.mxu0 0
        %1131 = vmatpush1.bf16.msra.mxu0 0
        %1132 = vmatprep.subr.bf16.mxu0 0
        %1133 = vmatpush1.bf16.msra.mxu0 0
        %1134 = vmatprep.subr.bf16.mxu0 0
        %1135 = vmatpush1.bf16.msra.mxu0 0
        %1136 = vmatprep.subr.bf16.mxu0 0
        %1137 = vmatpush1.bf16.msra.mxu0 0
        %1138 = vmatprep.subr.bf16.mxu0 0
        %1139 = vmatpush1.bf16.msra.mxu0 0
        %1140 = vmatprep.subr.bf16.mxu0 0
        %1141 = vmatpush1.bf16.msra.mxu0 0
        %1142 = vmatprep.subr.bf16.mxu0 0
        %1143 = vmatpush1.bf16.msra.mxu0 0
        %1144 = vmatprep.subr.bf16.mxu0 0
        %1145 = vmatpush1.bf16.msra.mxu0 0
        %1146 = vmatprep.mubr.bf16.mxu0 0
        %1147 = vmatmul.mubr.bf16.gmra.mrb[0].mxu0 %v1112
        %v1148 = vpop.f32.mrb[0].mxu0
        %v1149 = vadd.f32 %v1098, %v1148
        %v1150 = vpop.f32.mrb[0].mxu0
        %v1151 = vpop.f32.mrb[0].mxu0
        %v1152 = vpop.f32.mrb[0].mxu0
        %1153 = vdwg.mxu0
        %v1154 = vadd.f32 %v522, %v1149
        %v1155 = vsel %vm524, %v1154, 0.0
        %1156 = vadd.xlane.f32.xlu0 %v1155
        %v1157 = vpop.xlane.xlu0 %1156
        %v1158 = vmul.f32 %v1157, %v528
        %v1159 = vsub.f32 %v1154, %v1158
        %v1160 = vmul.f32 %v1159, %v1159
        %v1161 = vsel %vm524, %v1160, 0.0
        %1162 = vadd.xlane.f32.xlu0 %v1161
        %v1163 = vpop.xlane.xlu0 %1162
        %v1164 = vmul.f32 %v1163, %v528
        %v1165 = vadd.f32 %v1164, 1e-05
        %v1166 = vrsqrt.pop %v1165
        %v1167 = vmul.f32 %v1159, %v1166
        %v1168 = vlaneseq
        %v1169 = vshrl.u32 %v1168, 7
        %v1170 = vsub.s32 3, %v1169
        %v1171 = vrot.slane %v523, %v1170
        %v1172 = vmul.f32 %v1167, %v1171
        %v1173 = vlaneseq
        %v1174 = vshrl.u32 %v1173, 7
        %v1175 = vsub.s32 4, %v1174
        %v1176 = vrot.slane %v523, %v1175
        %v1177 = vadd.f32 %v1172, %v1176
        %v1178 = vpack.c.bf16 %v1177, %v1177
        %v1179 = vld [vmem:[%s431] sm:$0xf]
        %v1180 = vld [vmem:[%s431 + $0x4] sm:$0xf]
        %v1181 = vld [vmem:[%s431 + $0x8] sm:$0xf]
        %v1182 = vld [vmem:[%s431 + $0xc] sm:$0xf]
        %v1183 = vlaneseq
        %v1184 = vshrl.u32 %v1183, 7
        %v1185 = vsub.s32 5, %v1184
        %v1186 = vrot.slane %v523, %v1185
        %v1191 = vunpack.c.l.b16 %v1179
        %v1192 = vunpack.c.l.b16 %v1180
        %v1193 = vunpack.c.l.b16 %v1181
        %v1194 = vunpack.c.l.b16 %v1182
        %v1195 = vpack.c.b16 %v1192, %v1191
        %v1196 = vpack.c.b16 %v1194, %v1193
        %v1200 = vsel %vm524, %v1178, 0
        %1202 = vmatprep.subr.bf16.mxu0 0
        %1203 = vmatpush1.bf16.msra.mxu0 %v1195
        %1204 = vmatprep.subr.bf16.mxu0 0
        %1205 = vmatpush1.bf16.msra.mxu0 %v1196
        %1206 = vmatprep.subr.bf16.mxu0 0
        %1207 = vmatpush1.bf16.msra.mxu0 0
        %1208 = vmatprep.subr.bf16.mxu0 0
        %1209 = vmatpush1.bf16.msra.mxu0 0
        %1210 = vmatprep.subr.bf16.mxu0 0
        %1211 = vmatpush1.bf16.msra.mxu0 0
        %1212 = vmatprep.subr.bf16.mxu0 0
        %1213 = vmatpush1.bf16.msra.mxu0 0
        %1214 = vmatprep.subr.bf16.mxu0 0
        %1215 = vmatpush1.bf16.msra.mxu0 0
        %1216 = vmatprep.subr.bf16.mxu0 0
        %1217 = vmatpush1.bf16.msra.mxu0 0
        %1218 = vmatprep.subr.bf16.mxu0 0
        %1219 = vmatpush1.bf16.msra.mxu0 0
        %1220 = vmatprep.subr.bf16.mxu0 0
        %1221 = vmatpush1.bf16.msra.mxu0 0
        %1222 = vmatprep.subr.bf16.mxu0 0
        %1223 = vmatpush1.bf16.msra.mxu0 0
        %1224 = vmatprep.subr.bf16.mxu0 0
        %1225 = vmatpush1.bf16.msra.mxu0 0
        %1226 = vmatprep.subr.bf16.mxu0 0
        %1227 = vmatpush1.bf16.msra.mxu0 0
        %1228 = vmatprep.subr.bf16.mxu0 0
        %1229 = vmatpush1.bf16.msra.mxu0 0
        %1230 = vmatprep.subr.bf16.mxu0 0
        %1231 = vmatpush1.bf16.msra.mxu0 0
        %1232 = vmatprep.subr.bf16.mxu0 0
        %1233 = vmatpush1.bf16.msra.mxu0 0
        %1234 = vmatprep.mubr.bf16.mxu0 0
        %1235 = vmatmul.mubr.bf16.gmra.mrb[0].mxu0 %v1200
        %v1236 = vpop.f32.mrb[0].mxu0
        %v1237 = vadd.f32 %v1186, %v1236
        %v1238 = vpop.f32.mrb[0].mxu0
        %v1239 = vpop.f32.mrb[0].mxu0
        %v1240 = vpop.f32.mrb[0].mxu0
        %1241 = vdwg.mxu0
        %v1242 = vpack.c.bf16 %v1237, %v1237
        %v1243 = vmul.bf16 %v1242, 1056980736
        %v1244 = vmul.bf16 %v1242, 1027030327
        %v1245 = vmul.bf16 %v1244, %v1242
        %v1246 = vmul.bf16 %v1245, %v1242
        %v1247 = vadd.bf16 %v1242, %v1246
        %v1248 = vmul.bf16 %v1247, 1061961548
        %v1249 = vtanh.bf16.pop %v1248
        %v1250 = vadd.bf16 %v1249, 1065369472
        %v1251 = vmul.bf16 %v1243, %v1250
        %v1252 = vld [vmem:[%s440] sm:$0xf]
        %v1253 = vld [vmem:[%s440 + $0x4] sm:$0xf]
        %v1254 = vld [vmem:[%s440 + $0x8] sm:$0xf]
        %v1255 = vld [vmem:[%s440 + $0xc] sm:$0xf]
        %v1256 = vld [vmem:[%s440 + $0x10] sm:$0xf]
        %v1257 = vld [vmem:[%s440 + $0x14] sm:$0xf]
        %v1258 = vld [vmem:[%s440 + $0x18] sm:$0xf]
        %v1259 = vld [vmem:[%s440 + $0x1c] sm:$0xf]
        %v1260 = vld [vmem:[%s440 + $0x20] sm:$0xf]
        %v1261 = vld [vmem:[%s440 + $0x24] sm:$0xf]
        %v1262 = vld [vmem:[%s440 + $0x28] sm:$0xf]
        %v1263 = vld [vmem:[%s440 + $0x2c] sm:$0xf]
        %v1264 = vld [vmem:[%s440 + $0x30] sm:$0xf]
        %v1265 = vld [vmem:[%s440 + $0x34] sm:$0xf]
        %v1266 = vld [vmem:[%s440 + $0x38] sm:$0xf]
        %v1267 = vld [vmem:[%s440 + $0x3c] sm:$0xf]
        %v1268 = vlaneseq
        %v1269 = vshrl.u32 %v1268, 7
        %v1270 = vsub.s32 6, %v1269
        %v1271 = vrot.slane %v523, %v1270
        %v1288 = vunpack.c.l.b16 %v1252
        %v1289 = vunpack.c.l.b16 %v1253
        %v1290 = vunpack.c.l.b16 %v1254
        %v1291 = vunpack.c.l.b16 %v1255
        %v1292 = vunpack.c.l.b16 %v1256
        %v1293 = vunpack.c.l.b16 %v1257
        %v1294 = vunpack.c.l.b16 %v1258
        %v1295 = vunpack.c.l.b16 %v1259
        %v1296 = vunpack.c.l.b16 %v1260
        %v1297 = vunpack.c.l.b16 %v1261
        %v1298 = vunpack.c.l.b16 %v1262
        %v1299 = vunpack.c.l.b16 %v1263
        %v1300 = vunpack.c.l.b16 %v1264
        %v1301 = vunpack.c.l.b16 %v1265
        %v1302 = vunpack.c.l.b16 %v1266
        %v1303 = vunpack.c.l.b16 %v1267
        %v1304 = vpack.c.b16 %v1289, %v1288
        %v1305 = vpack.c.b16 %v1291, %v1290
        %v1306 = vpack.c.b16 %v1293, %v1292
        %v1307 = vpack.c.b16 %v1295, %v1294
        %v1308 = vpack.c.b16 %v1297, %v1296
        %v1309 = vpack.c.b16 %v1299, %v1298
        %v1310 = vpack.c.b16 %v1301, %v1300
        %v1311 = vpack.c.b16 %v1303, %v1302
        %1320 = vmatprep.subr.bf16.mxu0 0
        %1321 = vmatpush1.bf16.msra.mxu0 %v1304
        %1322 = vmatprep.subr.bf16.mxu0 0
        %1323 = vmatpush1.bf16.msra.mxu0 %v1305
        %1324 = vmatprep.subr.bf16.mxu0 0
        %1325 = vmatpush1.bf16.msra.mxu0 %v1306
        %1326 = vmatprep.subr.bf16.mxu0 0
        %1327 = vmatpush1.bf16.msra.mxu0 %v1307
        %1328 = vmatprep.subr.bf16.mxu0 0
        %1329 = vmatpush1.bf16.msra.mxu0 %v1308
        %1330 = vmatprep.subr.bf16.mxu0 0
        %1331 = vmatpush1.bf16.msra.mxu0 %v1309
        %1332 = vmatprep.subr.bf16.mxu0 0
        %1333 = vmatpush1.bf16.msra.mxu0 %v1310
        %1334 = vmatprep.subr.bf16.mxu0 0
        %1335 = vmatpush1.bf16.msra.mxu0 %v1311
        %1336 = vmatprep.subr.bf16.mxu0 0
        %1337 = vmatpush1.bf16.msra.mxu0 0
        %1338 = vmatprep.subr.bf16.mxu0 0
        %1339 = vmatpush1.bf16.msra.mxu0 0
        %1340 = vmatprep.subr.bf16.mxu0 0
        %1341 = vmatpush1.bf16.msra.mxu0 0
        %1342 = vmatprep.subr.bf16.mxu0 0
        %1343 = vmatpush1.bf16.msra.mxu0 0
        %1344 = vmatprep.subr.bf16.mxu0 0
        %1345 = vmatpush1.bf16.msra.mxu0 0
        %1346 = vmatprep.subr.bf16.mxu0 0
        %1347 = vmatpush1.bf16.msra.mxu0 0
        %1348 = vmatprep.subr.bf16.mxu0 0
        %1349 = vmatpush1.bf16.msra.mxu0 0
        %1350 = vmatprep.subr.bf16.mxu0 0
        %1351 = vmatpush1.bf16.msra.mxu0 0
        %1352 = vmatprep.mubr.bf16.mxu0 0
        %1353 = vmatmul.mubr.bf16.gmra.mrb[0].mxu0 %v1251
        %v1354 = vpop.f32.mrb[0].mxu0
        %v1355 = vadd.f32 %v1271, %v1354
        %v1356 = vpop.f32.mrb[0].mxu0
        %v1357 = vpop.f32.mrb[0].mxu0
        %v1358 = vpop.f32.mrb[0].mxu0
        %1359 = vdwg.mxu0
        %v1360 = vadd.f32 %v1154, %v1355
        %1361 = vst.msk [vmem:[#allocation2] sm:$0xff] %vm524, %v1360
        %p1362 = scmp.eq.s32.totalorder %s38, 1
        // Predicated region
        $region81: #{gpt_forward.2} parent=47 // pred_check
          %p1363 = pneg %p1362
        $region82: #{gpt_forward.2} parent=47 // pred_check_branch
          %1365 = sbr.rel (%p1363) target = $region84
        $region83: #{gpt_forward.2} parent=47 // pred_region
          %v1366 = vld [vmem:[#allocation15] sm:$0x1]
          %v1367 = vld [vmem:[#allocation15 + $0x1] sm:$0x1]
          %v1368 = vsel %vm524, %v1360, 0.0
          %1369 = vadd.xlane.f32.xlu0 %v1368
          %v1370 = vpop.xlane.xlu0 %1369
          %v1371 = vmul.f32 %v1370, %v528
          %v1372 = vsub.f32 %v1360, %v1371
          %v1373 = vmul.f32 %v1372, %v1372
          %v1374 = vsel %vm524, %v1373, 0.0
          %1375 = vadd.xlane.f32.xlu0 %v1374
          %v1376 = vpop.xlane.xlu0 %1375
          %v1377 = vmul.f32 %v1376, %v528
          %v1378 = vadd.f32 %v1377, 1e-05
          %v1379 = vrsqrt.pop %v1378
          %v1380 = vmul.f32 %v1372, %v1379
          %v1381 = vlaneseq
          %v1382 = vshrl.u32 %v1381, 7
          %v1383 = vsub.s32 0, %v1382
          %v1384 = vrot.slane %v1366, %v1383
          %v1385 = vmul.f32 %v1380, %v1384
          %v1386 = vlaneseq
          %v1387 = vshrl.u32 %v1386, 7
          %v1388 = vsub.s32 0, %v1387
          %v1389 = vrot.slane %v1367, %v1388
          %v1390 = vadd.f32 %v1385, %v1389
          %v1391 = vpack.c.bf16 %v1390, %v1390
          %vm1392 = vcmask 257024
          %1393 = vst.msk [vmem:[%s508] sm:$0xf] %vm1392, %v1391
        $region84: #{gpt_forward.2} parent=47 // pred_fallthru
          _
        %s1394 = sand.u32 %s230, 1
        %s1395 = scalar_lea.sflag [#allocation6], %s1394
        %s1396 = sand.u32 %s230, 1
        %s1397 = smul.addr %s1396, 4
        %s1398 = scalar_lea.vmem [#allocation16], %s1397
        // Predicated region
        $region85: #{gpt_forward.2} parent=47 // pred_check
          %p1399 = pneg %p240
        $region86: #{gpt_forward.2} parent=47 // pred_check_branch
          %1401 = sbr.rel (%p1399) target = $region88
        $region87: #{gpt_forward.2} parent=47 // pred_region
          %s1403 = ssub.s32 64, 64
          %1404 = vsyncadd %s1395, %s1403
          %s1405 = smul.addr %s37, 64
          %s1406 = scalar_lea.hbm %s7, %s1405
          %s1408 = sshll.u32 %s1398, 4
          %s1409 = int_to_ptr.vmem [resolvable:$true] %s1408
          %1411 = dma.vmem_to_hbm [thread:$0]  %s1409, 64, %s1406, %s1395
        $region88: #{gpt_forward.2} parent=47 // pred_fallthru
          _
      $region48: #{gpt_forward.2} parent=5 // pred_fallthru
        _
      %p1412 = scmp.le.s32.totalorder 2, %s28
      // Predicated region
      $region89: #{gpt_forward.2} parent=5 // pred_check
        %p1413 = pneg %p1412
      $region90: #{gpt_forward.2} parent=5 // pred_check_branch
        %1415 = sbr.rel (%p1413) target = $region92
      $region91: #{gpt_forward.2} parent=5 // pred_region
        %s1416 = ssub.s32 %s28, 2
        // Predicated region
        $region93: #{gpt_forward.2} parent=91 // pred_check
          %p1417 = pneg %p246
        $region94: #{gpt_forward.2} parent=91 // pred_check_branch
          %1419 = sbr.rel (%p1417) target = $region96
        $region95: #{gpt_forward.2} parent=91 // pred_region
          %s1420 = sand.u32 %s231, 1
          %s1421 = scalar_lea.sflag [#allocation6], %s1420
          %s1422 = sand.u32 %s231, 1
          %s1423 = smul.addr %s1422, 4
          %s1424 = scalar_lea.vmem [#allocation16], %s1423
          %1425 = dma.done %s1421, 64
        $region96: #{gpt_forward.2} parent=91 // pred_fallthru
          _
      $region92: #{gpt_forward.2} parent=5 // pred_fallthru
        _
    $region6: #{gpt_forward.2} parent=1 // loop_footer
      %s32 = sadd.s32 1, %s28
    $region7: #{gpt_forward.2} parent=1 // loop_footer_branch
      %27 = sbr.rel target = $region3
    $region8: #{gpt_forward.2} parent=1 // loop_exit
      _
    %1426 = vsyncpa [#allocation5], 1
    %s1427 = scalar_lea.sflag [#allocation5], 1
    %1428 = vsyncpa %s1427, 1
    %1429 = vsyncpa [#allocation8], 1
    %s1430 = scalar_lea.sflag [#allocation8], 1
    %1431 = vsyncpa %s1430, 1
    %1432 = vsyncpa [#allocation11], 1
    %s1433 = scalar_lea.sflag [#allocation11], 1
    %1434 = vsyncpa %s1433, 1
    %1435 = vsyncpa [#allocation14], 1
    %s1436 = scalar_lea.sflag [#allocation14], 1
    %1437 = vsyncpa %s1436, 1
    %1438 = vsyncpa [#allocation6], 1
    %s1439 = scalar_lea.sflag [#allocation6], 1
    %1440 = vsyncpa %s1439, 1

</llo_original>
